<compile_context>
chip_gen: v7x
topology: tpu7x:2x2x1
jax: 0.10.0
libtpu: 0.0.40
codegen_flags: <defaults>
</compile_context>

<pallas_src>
import functools

import numpy as np
import jax
import jax.numpy as jnp
from jax.experimental import pallas as pl
from jax.experimental.pallas import tpu as pltpu

HID_DIM = 32
N_HEADS = 4
HEAD_DIM = HID_DIM // N_HEADS
BATCH = 2            # demo batch (small shape consistent with the module)

# Softmax-stage lane chunk: one vreg wide; per-(chunk, head) working set is
# ~20 f32 vregs, well inside the 64-vreg file on every TPU generation.
LANE_CHUNK = 128


def attention_block_kernel(x_ref, w_ref, b_ref, o_ref, qkv_s, pre_s):
    """One batch tile of the AttentionBlock forward.

    Refs (VMEM blocks):
      x_ref : (3*HID_DIM, B_TILE)      lane-dense feature-major [q; k; v]
      w_ref : (4*HID_DIM, 3*HID_DIM)   rows 0:96  block-diag(Wq/sqrt(dh), Wk, Wv)
                                       rows 96:128 [Wfc_perm | 0]
      b_ref : (4*HID_DIM, 1)           [bq/sqrt(dh); bk; bv; bfc]
      o_ref : (HID_DIM, B_TILE)        feature-major output tile
    Scratch:
      qkv_s : VMEM (3*HID_DIM, B_TILE) projected Q | K | V
      pre_s : VMEM (HID_DIM, B_TILE)   pre-fc activation (head-major features)
    """
    b_tile = x_ref.shape[1]
    n_chunks = b_tile // LANE_CHUNK          # static Python int

    # (1) Fused Q/K/V projection: one lane-dense (96,96) x (96,B_TILE) MXU
    #     matmul (scale already folded into Wq/bq at pack time).
    qkv_s[...] = (
        jnp.dot(w_ref[0:3 * HID_DIM, :], x_ref[...],
                preferred_element_type=jnp.float32)
        + b_ref[0:3 * HID_DIM, :])

    # (2) Softmax attention per (128-lane chunk, head) with bounded live ranges.
    def chunk_body(c, carry):
        col = pl.multiple_of(c * LANE_CHUNK, LANE_CHUNK)
        cols = pl.ds(col, LANE_CHUNK)

        def head_body(h, carry_h):
            row = pl.multiple_of(h * HEAD_DIM, HEAD_DIM)
            q_h = qkv_s[pl.ds(row, HEAD_DIM), cols]                       # (dh, LC)
            k_h = qkv_s[pl.ds(pl.multiple_of(HID_DIM + row, HEAD_DIM),
                              HEAD_DIM), cols]                            # (dh, LC)
            v_h = qkv_s[pl.ds(pl.multiple_of(2 * HID_DIM + row, HEAD_DIM),
                              HEAD_DIM), cols]                            # (dh, LC)

            # Exact row max of e[i,j,b] = q_i*k_j via kmax/kmin: only 2 small
            # sublane reduces instead of a full (dh,dh) cross-sublane max.
            kmax = jnp.max(k_h, axis=0, keepdims=True)                    # (1, LC)
            kmin = jnp.min(k_h, axis=0, keepdims=True)                    # (1, LC)
            rowmax = jnp.where(q_h >= 0.0, q_h * kmax, q_h * kmin)        # (dh, LC)

            # energy (already scaled), numerically stable exp.
            e = q_h[:, None, :] * k_h[None, :, :] - rowmax[:, None, :]    # (dh,dh,LC)
            p = jnp.exp(e)

            # attention @ V on the VPU (multiply + sublane reduce over j),
            # EUP approximate reciprocal for the softmax normalizer.
            num = jnp.sum(p * v_h[None, :, :], axis=1)                    # (dh, LC)
            den = jnp.sum(p, axis=1)                                      # (dh, LC)
            wm = num * pl.reciprocal(den, approx=True)                    # (dh, LC)

            # Head-major pre-fc activation; PyTorch's permute(0,2,1,3)+view is
            # folded into the column permutation of Wfc at pack time.
            pre_s[pl.ds(row, HEAD_DIM), cols] = wm
            return carry_h

        return jax.lax.fori_loop(0, N_HEADS, head_body, carry, unroll=True)

    jax.lax.fori_loop(0, n_chunks, chunk_body, 0, unroll=True)

    # (3) fc at full tile width -> one fat MXU push, lane-dense output store.
    #     Dropout = identity (eval mode).
    o_ref[...] = (
        jnp.dot(w_ref[3 * HID_DIM:4 * HID_DIM, 0:HID_DIM], pre_s[...],
                preferred_element_type=jnp.float32)
        + b_ref[3 * HID_DIM:4 * HID_DIM, :])


def pack_params(params):
    """One-time parameter packing / transform (NOT done per forward call).

      * 1/sqrt(head_dim) folded into Wq AND bq (Q only feeds the energy).
      * Wq/Wk/Wv packed block-diagonally -> single fused projection matmul
        against the concatenated feature-major [q; k; v] input.
      * PyTorch's permute(0,2,1,3)+view folded into a column permutation of Wfc.
    """
    wq, bq, wk, bk, wv, bv, wfc, bfc = params
    inv_scale = 1.0 / float(np.sqrt(HEAD_DIM))

    w_qkv = jax.scipy.linalg.block_diag(wq * inv_scale, wk, wv)        # (96, 96)

    # head-major column c = h*dh + d reads PyTorch flat column d*n_heads + h.
    c = np.arange(HID_DIM)
    perm = (c % HEAD_DIM) * N_HEADS + (c // HEAD_DIM)
    wfc_row = jnp.pad(wfc[:, perm], ((0, 0), (0, 2 * HID_DIM)))         # (32, 96)

    w_pack = jnp.concatenate([w_qkv, wfc_row], axis=0)                  # (128, 96)
    b_pack = jnp.concatenate([bq * inv_scale, bk, bv, bfc])[:, None]    # (128, 1)
    return w_pack.astype(jnp.float32), b_pack.astype(jnp.float32)


@functools.partial(jax.jit, static_argnames=("feature_major_out",))
def attention_block_pallas(query, key, value, w_pack, b_pack, *,
                           feature_major_out=False):
    """AttentionBlock forward.  query/key/value: (B, HID_DIM) float32."""
    batch = query.shape[0]
    n128 = -(-batch // LANE_CHUNK)           # ceil-div, Python int (static)

    # Larger grid steps amortize the ~0.35us/step Pallas overhead for big
    # batches, while keeping >=2 grid steps when possible (v7x: both TCs busy).
    if n128 >= 8:
        chunks_per_tile = 4                  # 512-lane tiles
    elif n128 >= 4:
        chunks_per_tile = 2                  # 256-lane tiles
    else:
        chunks_per_tile = 1                  # 128-lane tiles
    b_tile = chunks_per_tile * LANE_CHUNK
    n_tiles = -(-batch // b_tile)
    padded = n_tiles * b_tile

    # Lane-dense feature-major [q; k; v]: one wrapper-side layout op replaces
    # three per-projection in-kernel transposes and cuts input DMAs 3 -> 1.
    # Padded lane columns compute finite garbage and are sliced off.
    qkv = jnp.concatenate([query.T, key.T, value.T], axis=0)            # (96, B)
    if padded != batch:
        qkv = jnp.pad(qkv, ((0, 0), (0, padded - batch)))

    outT = pl.pallas_call(
        attention_block_kernel,
        out_shape=jax.ShapeDtypeStruct((HID_DIM, padded), jnp.float32),
        grid=(n_tiles,),
        in_specs=[
            pl.BlockSpec((3 * HID_DIM, b_tile), lambda i: (0, i)),       # qkv
            pl.BlockSpec((4 * HID_DIM, 3 * HID_DIM), lambda i: (0, 0)),  # weights
            pl.BlockSpec((4 * HID_DIM, 1), lambda i: (0, 0)),            # biases
        ],
        out_specs=pl.BlockSpec((HID_DIM, b_tile), lambda i: (0, i)),
        scratch_shapes=[
            pltpu.VMEM((3 * HID_DIM, b_tile), jnp.float32),   # projected Q|K|V
            pltpu.VMEM((HID_DIM, b_tile), jnp.float32),       # pre-fc activation
        ],
        compiler_params=pltpu.CompilerParams(
            dimension_semantics=("parallel",)),
    )(qkv, w_pack, b_pack)

    outT = outT[:, :batch]
    if feature_major_out:
        return outT              # (HID_DIM, B): skips the extra HBM transpose
    return outT.T                # natural (B, HID_DIM) for API compatibility


def attention_block_reference(query, key, value, params):
    """Plain-JAX transcription of the PyTorch forward (eval mode)."""
    wq, bq, wk, bk, wv, bv, wfc, bfc = params
    B = query.shape[0]
    Q = query @ wq.T + bq
    K = key @ wk.T + bk
    V = value @ wv.T + bv
    Q = Q.reshape(B, N_HEADS, HEAD_DIM)[..., None]                      # (B,nh,dh,1)
    K_T = K.reshape(B, N_HEADS, HEAD_DIM)[..., None].transpose(0, 1, 3, 2)
    V = V.reshape(B, N_HEADS, HEAD_DIM)[..., None]
    energy = jnp.matmul(Q, K_T) / jnp.sqrt(jnp.float32(HEAD_DIM))
    attn = jax.nn.softmax(energy, axis=-1)                              # dropout=id
    wm = jnp.matmul(attn, V)                                            # (B,nh,dh,1)
    wm = wm.transpose(0, 2, 1, 3).reshape(B, HID_DIM)
    return wm @ wfc.T + bfc                                             # dropout=id


def make_params(key):
    ks = jax.random.split(key, 8)
    init = lambda k, shape, s=0.1: (s * jax.random.normal(k, shape)).astype(jnp.float32)
    wq = init(ks[0], (HID_DIM, HID_DIM))
    bq = init(ks[1], (HID_DIM,))
    wk = init(ks[2], (HID_DIM, HID_DIM))
    bk = init(ks[3], (HID_DIM,))
    wv = init(ks[4], (HID_DIM, HID_DIM))
    bv = init(ks[5], (HID_DIM,))
    wfc = init(ks[6], (HID_DIM, HID_DIM))
    bfc = init(ks[7], (HID_DIM,))
    return (wq, bq, wk, bk, wv, bv, wfc, bfc)


if __name__ == "__main__":
    root = jax.random.PRNGKey(0)
    kp, kq, kk, kv = jax.random.split(root, 4)
    params = make_params(kp)
    w_pack, b_pack = pack_params(params)      # one-time packing / scale / fc-perm fold

    # Small, module-consistent shapes: single 128-lane tile.
    query = jax.random.normal(kq, (BATCH, HID_DIM), dtype=jnp.float32)
    key_in = jax.random.normal(kk, (BATCH, HID_DIM), dtype=jnp.float32)
    value = jax.random.normal(kv, (BATCH, HID_DIM), dtype=jnp.float32)

    out = jax.block_until_ready(
        attention_block_pallas(query, key_in, value, w_pack, b_pack))
    ref = attention_block_reference(query, key_in, value, params)
    assert out.shape == (BATCH, HID_DIM)
    # Tolerance allows for the approximate EUP reciprocal in the softmax.
    assert jnp.allclose(out, ref, atol=2e-3, rtol=2e-3), (
        f"max abs err {jnp.max(jnp.abs(out - ref))}")

    # Medium batch: three 128-lane grid tiles.
    kq2, kk2, kv2 = jax.random.split(jax.random.PRNGKey(1), 3)
    B2 = 300
    q2 = jax.random.normal(kq2, (B2, HID_DIM), dtype=jnp.float32)
    k2 = jax.random.normal(kk2, (B2, HID_DIM), dtype=jnp.float32)
    v2 = jax.random.normal(kv2, (B2, HID_DIM), dtype=jnp.float32)
    out2 = jax.block_until_ready(
        attention_block_pallas(q2, k2, v2, w_pack, b_pack))
    ref2 = attention_block_reference(q2, k2, v2, params)
    assert out2.shape == (B2, HID_DIM)
    assert jnp.allclose(out2, ref2, atol=2e-3, rtol=2e-3), (
        f"max abs err {jnp.max(jnp.abs(out2 - ref2))}")

    # Large batch: two 512-lane tiles, 4-chunk inner softmax loop per tile.
    kq3, kk3, kv3 = jax.random.split(jax.random.PRNGKey(2), 3)
    B3 = 1024
    q3 = jax.random.normal(kq3, (B3, HID_DIM), dtype=jnp.float32)
    k3 = jax.random.normal(kk3, (B3, HID_DIM), dtype=jnp.float32)
    v3 = jax.random.normal(kv3, (B3, HID_DIM), dtype=jnp.float32)
    out3 = jax.block_until_ready(
        attention_block_pallas(q3, k3, v3, w_pack, b_pack))
    ref3 = attention_block_reference(q3, k3, v3, params)
    assert out3.shape == (B3, HID_DIM)
    assert jnp.allclose(out3, ref3, atol=2e-3, rtol=2e-3), (
        f"max abs err {jnp.max(jnp.abs(out3 - ref3))}")

    # TODO(synk): dropout is identity (eval mode) and the optional attention
    # mask argument is not implemented (mask=None path only).
    print("KERNEL_OK")
</pallas_src>

<mosaic_0001>
module attributes {stable_mosaic.version = 11 : i64} {
  func.func @attention_block_kernel(%arg0: i32, %arg1: memref<96x128xf32, #tpu.memory_space<vmem>>, %arg2: memref<128x96xf32, #tpu.memory_space<vmem>>, %arg3: memref<128x1xf32, #tpu.memory_space<vmem>>, %arg4: memref<32x128xf32, #tpu.memory_space<vmem>>, %arg5: memref<96x128xf32, #tpu.memory_space<vmem>>, %arg6: memref<32x128xf32, #tpu.memory_space<vmem>>) attributes {dimension_semantics = [#tpu.dimension_semantics<parallel>], iteration_bounds = array<i64: 1>, scalar_prefetch = 0 : i64, scratch_operands = 2 : i64, tpu.core_type = #tpu.core_type<tc>, window_params = [{transform_indices = @transform_0, window_bounds = array<i64: 96, 128>}, {pipeline_mode = #tpu.pipeline_mode<synchronous>, transform_indices = @transform_1, window_bounds = array<i64: 128, 96>}, {pipeline_mode = #tpu.pipeline_mode<synchronous>, transform_indices = @transform_2, window_bounds = array<i64: 128, 1>}, {transform_indices = @transform_3, window_bounds = array<i64: 32, 128>}]} {
    %c0 = arith.constant 0 : index
    %c0_0 = arith.constant 0 : index
    %0 = vector.load %arg2[%c0, %c0_0] : memref<128x96xf32, #tpu.memory_space<vmem>>, vector<96x96xf32>
    %c0_1 = arith.constant 0 : index
    %c0_2 = arith.constant 0 : index
    %1 = vector.load %arg1[%c0_1, %c0_2] : memref<96x128xf32, #tpu.memory_space<vmem>>, vector<96x128xf32>
    %cst = arith.constant dense<0.000000e+00> : vector<96x128xf32>
    %2 = tpu.matmul %0, %1, %cst {dimension_numbers = #tpu.dot_dimension_numbers<[1], [0], [0], [1], [0, 0, 1, 1], [], []>} : vector<96x96xf32>, vector<96x128xf32>, vector<96x128xf32> -> vector<96x128xf32>
    %c0_3 = arith.constant 0 : index
    %c0_4 = arith.constant 0 : index
    %3 = vector.load %arg3[%c0_3, %c0_4] : memref<128x1xf32, #tpu.memory_space<vmem>>, vector<96x1xf32>
    %4 = vector.broadcast %3 : vector<96x1xf32> to vector<96x128xf32>
    %5 = arith.addf %2, %4 : vector<96x128xf32>
    %c0_5 = arith.constant 0 : index
    %c0_6 = arith.constant 0 : index
    %6 = vector.load %arg5[%c0_5, %c0_6] : memref<96x128xf32, #tpu.memory_space<vmem>>, vector<96x128xf32>
    tpu.vector_store %arg5[%c0_5, %c0_6], %5 {strides = array<i32>} : memref<96x128xf32, #tpu.memory_space<vmem>>, vector<96x128xf32>,
    %c0_i32 = arith.constant 0 : i32
    %c128_i32 = arith.constant 128 : i32
    %7 = arith.muli %c0_i32, %c128_i32 : i32
    %8 = tpu.assume_multiple %7, 128 : i32
    %c0_i32_7 = arith.constant 0 : i32
    %c8_i32 = arith.constant 8 : i32
    %9 = arith.muli %c0_i32_7, %c8_i32 : i32
    %10 = tpu.assume_multiple %9, 8 : i32
    %11 = arith.index_cast %10 : i32 to index
    %12 = arith.index_cast %8 : i32 to index
    %13 = vector.load %arg5[%11, %12] : memref<96x128xf32, #tpu.memory_space<vmem>>, vector<8x128xf32>
    %c32_i32 = arith.constant 32 : i32
    %14 = arith.addi %c32_i32, %10 : i32
    %15 = tpu.assume_multiple %14, 8 : i32
    %16 = arith.index_cast %15 : i32 to index
    %17 = arith.index_cast %8 : i32 to index
    %18 = vector.load %arg5[%16, %17] : memref<96x128xf32, #tpu.memory_space<vmem>>, vector<8x128xf32>
    %c64_i32 = arith.constant 64 : i32
    %19 = arith.addi %c64_i32, %10 : i32
    %20 = tpu.assume_multiple %19, 8 : i32
    %21 = arith.index_cast %20 : i32 to index
    %22 = arith.index_cast %8 : i32 to index
    %23 = vector.load %arg5[%21, %22] : memref<96x128xf32, #tpu.memory_space<vmem>>, vector<8x128xf32>
    %cst_8 = arith.constant dense<0xFF800000> : vector<128xf32>
    %24 = vector.multi_reduction <maximumf>, %18, %cst_8 [0] : vector<8x128xf32> to vector<128xf32>
    %25 = vector.shape_cast %24 : vector<128xf32> to vector<1x128xf32>
    %cst_9 = arith.constant dense<0x7F800000> : vector<128xf32>
    %26 = vector.multi_reduction <minimumf>, %18, %cst_9 [0] : vector<8x128xf32> to vector<128xf32>
    %27 = vector.shape_cast %26 : vector<128xf32> to vector<1x128xf32>
    %cst_10 = arith.constant 0.000000e+00 : f32
    %28 = vector.broadcast %cst_10 : f32 to vector<8x128xf32>
    %29 = arith.cmpf oge, %13, %28 : vector<8x128xf32>
    %30 = vector.broadcast %25 : vector<1x128xf32> to vector<8x128xf32>
    %31 = arith.mulf %13, %30 : vector<8x128xf32>
    %32 = vector.broadcast %27 : vector<1x128xf32> to vector<8x128xf32>
    %33 = arith.mulf %13, %32 : vector<8x128xf32>
    %34 = arith.select %29, %31, %33 : vector<8x128xi1>, vector<8x128xf32>
    %35 = vector.shape_cast %13 : vector<8x128xf32> to vector<8x1x128xf32>
    %36 = vector.shape_cast %18 : vector<8x128xf32> to vector<1x8x128xf32>
    %37 = vector.broadcast %35 : vector<8x1x128xf32> to vector<8x8x128xf32>
    %38 = vector.broadcast %36 : vector<1x8x128xf32> to vector<8x8x128xf32>
    %39 = arith.mulf %37, %38 : vector<8x8x128xf32>
    %40 = vector.shape_cast %34 : vector<8x128xf32> to vector<8x1x128xf32>
    %41 = vector.broadcast %40 : vector<8x1x128xf32> to vector<8x8x128xf32>
    %42 = arith.subf %39, %41 : vector<8x8x128xf32>
    %43 = math.exp %42 : vector<8x8x128xf32>
    %44 = vector.shape_cast %23 : vector<8x128xf32> to vector<1x8x128xf32>
    %45 = vector.broadcast %44 : vector<1x8x128xf32> to vector<8x8x128xf32>
    %46 = arith.mulf %43, %45 : vector<8x8x128xf32>
    %cst_11 = arith.constant dense<0.000000e+00> : vector<8x128xf32>
    %47 = vector.multi_reduction <add>, %46, %cst_11 [1] : vector<8x8x128xf32> to vector<8x128xf32>
    %cst_12 = arith.constant dense<0.000000e+00> : vector<8x128xf32>
    %48 = vector.multi_reduction <add>, %43, %cst_12 [1] : vector<8x8x128xf32> to vector<8x128xf32>
    %49 = tpu.reciprocal %48 {approx = true} : vector<8x128xf32> -> vector<8x128xf32>
    %50 = arith.mulf %47, %49 : vector<8x128xf32>
    %51 = arith.index_cast %10 : i32 to index
    %52 = arith.index_cast %8 : i32 to index
    %53 = vector.load %arg6[%51, %52] : memref<32x128xf32, #tpu.memory_space<vmem>>, vector<8x128xf32>
    tpu.vector_store %arg6[%51, %52], %50 {strides = array<i32>} : memref<32x128xf32, #tpu.memory_space<vmem>>, vector<8x128xf32>,
    %c1_i32 = arith.constant 1 : i32
    %c8_i32_13 = arith.constant 8 : i32
    %54 = arith.muli %c1_i32, %c8_i32_13 : i32
    %55 = tpu.assume_multiple %54, 8 : i32
    %56 = arith.index_cast %55 : i32 to index
    %57 = arith.index_cast %8 : i32 to index
    %58 = vector.load %arg5[%56, %57] : memref<96x128xf32, #tpu.memory_space<vmem>>, vector<8x128xf32>
    %c32_i32_14 = arith.constant 32 : i32
    %59 = arith.addi %c32_i32_14, %55 : i32
    %60 = tpu.assume_multiple %59, 8 : i32
    %61 = arith.index_cast %60 : i32 to index
    %62 = arith.index_cast %8 : i32 to index
    %63 = vector.load %arg5[%61, %62] : memref<96x128xf32, #tpu.memory_space<vmem>>, vector<8x128xf32>
    %c64_i32_15 = arith.constant 64 : i32
    %64 = arith.addi %c64_i32_15, %55 : i32
    %65 = tpu.assume_multiple %64, 8 : i32
    %66 = arith.index_cast %65 : i32 to index
    %67 = arith.index_cast %8 : i32 to index
    %68 = vector.load %arg5[%66, %67] : memref<96x128xf32, #tpu.memory_space<vmem>>, vector<8x128xf32>
    %cst_16 = arith.constant dense<0xFF800000> : vector<128xf32>
    %69 = vector.multi_reduction <maximumf>, %63, %cst_16 [0] : vector<8x128xf32> to vector<128xf32>
    %70 = vector.shape_cast %69 : vector<128xf32> to vector<1x128xf32>
    %cst_17 = arith.constant dense<0x7F800000> : vector<128xf32>
    %71 = vector.multi_reduction <minimumf>, %63, %cst_17 [0] : vector<8x128xf32> to vector<128xf32>
    %72 = vector.shape_cast %71 : vector<128xf32> to vector<1x128xf32>
    %cst_18 = arith.constant 0.000000e+00 : f32
    %73 = vector.broadcast %cst_18 : f32 to vector<8x128xf32>
    %74 = arith.cmpf oge, %58, %73 : vector<8x128xf32>
    %75 = vector.broadcast %70 : vector<1x128xf32> to vector<8x128xf32>
    %76 = arith.mulf %58, %75 : vector<8x128xf32>
    %77 = vector.broadcast %72 : vector<1x128xf32> to vector<8x128xf32>
    %78 = arith.mulf %58, %77 : vector<8x128xf32>
    %79 = arith.select %74, %76, %78 : vector<8x128xi1>, vector<8x128xf32>
    %80 = vector.shape_cast %58 : vector<8x128xf32> to vector<8x1x128xf32>
    %81 = vector.shape_cast %63 : vector<8x128xf32> to vector<1x8x128xf32>
    %82 = vector.broadcast %80 : vector<8x1x128xf32> to vector<8x8x128xf32>
    %83 = vector.broadcast %81 : vector<1x8x128xf32> to vector<8x8x128xf32>
    %84 = arith.mulf %82, %83 : vector<8x8x128xf32>
    %85 = vector.shape_cast %79 : vector<8x128xf32> to vector<8x1x128xf32>
    %86 = vector.broadcast %85 : vector<8x1x128xf32> to vector<8x8x128xf32>
    %87 = arith.subf %84, %86 : vector<8x8x128xf32>
    %88 = math.exp %87 : vector<8x8x128xf32>
    %89 = vector.shape_cast %68 : vector<8x128xf32> to vector<1x8x128xf32>
    %90 = vector.broadcast %89 : vector<1x8x128xf32> to vector<8x8x128xf32>
    %91 = arith.mulf %88, %90 : vector<8x8x128xf32>
    %cst_19 = arith.constant dense<0.000000e+00> : vector<8x128xf32>
    %92 = vector.multi_reduction <add>, %91, %cst_19 [1] : vector<8x8x128xf32> to vector<8x128xf32>
    %cst_20 = arith.constant dense<0.000000e+00> : vector<8x128xf32>
    %93 = vector.multi_reduction <add>, %88, %cst_20 [1] : vector<8x8x128xf32> to vector<8x128xf32>
    %94 = tpu.reciprocal %93 {approx = true} : vector<8x128xf32> -> vector<8x128xf32>
    %95 = arith.mulf %92, %94 : vector<8x128xf32>
    %96 = arith.index_cast %55 : i32 to index
    %97 = arith.index_cast %8 : i32 to index
    %98 = vector.load %arg6[%96, %97] : memref<32x128xf32, #tpu.memory_space<vmem>>, vector<8x128xf32>
    tpu.vector_store %arg6[%96, %97], %95 {strides = array<i32>} : memref<32x128xf32, #tpu.memory_space<vmem>>, vector<8x128xf32>,
    %c2_i32 = arith.constant 2 : i32
    %c8_i32_21 = arith.constant 8 : i32
    %99 = arith.muli %c2_i32, %c8_i32_21 : i32
    %100 = tpu.assume_multiple %99, 8 : i32
    %101 = arith.index_cast %100 : i32 to index
    %102 = arith.index_cast %8 : i32 to index
    %103 = vector.load %arg5[%101, %102] : memref<96x128xf32, #tpu.memory_space<vmem>>, vector<8x128xf32>
    %c32_i32_22 = arith.constant 32 : i32
    %104 = arith.addi %c32_i32_22, %100 : i32
    %105 = tpu.assume_multiple %104, 8 : i32
    %106 = arith.index_cast %105 : i32 to index
    %107 = arith.index_cast %8 : i32 to index
    %108 = vector.load %arg5[%106, %107] : memref<96x128xf32, #tpu.memory_space<vmem>>, vector<8x128xf32>
    %c64_i32_23 = arith.constant 64 : i32
    %109 = arith.addi %c64_i32_23, %100 : i32
    %110 = tpu.assume_multiple %109, 8 : i32
    %111 = arith.index_cast %110 : i32 to index
    %112 = arith.index_cast %8 : i32 to index
    %113 = vector.load %arg5[%111, %112] : memref<96x128xf32, #tpu.memory_space<vmem>>, vector<8x128xf32>
    %cst_24 = arith.constant dense<0xFF800000> : vector<128xf32>
    %114 = vector.multi_reduction <maximumf>, %108, %cst_24 [0] : vector<8x128xf32> to vector<128xf32>
    %115 = vector.shape_cast %114 : vector<128xf32> to vector<1x128xf32>
    %cst_25 = arith.constant dense<0x7F800000> : vector<128xf32>
    %116 = vector.multi_reduction <minimumf>, %108, %cst_25 [0] : vector<8x128xf32> to vector<128xf32>
    %117 = vector.shape_cast %116 : vector<128xf32> to vector<1x128xf32>
    %cst_26 = arith.constant 0.000000e+00 : f32
    %118 = vector.broadcast %cst_26 : f32 to vector<8x128xf32>
    %119 = arith.cmpf oge, %103, %118 : vector<8x128xf32>
    %120 = vector.broadcast %115 : vector<1x128xf32> to vector<8x128xf32>
    %121 = arith.mulf %103, %120 : vector<8x128xf32>
    %122 = vector.broadcast %117 : vector<1x128xf32> to vector<8x128xf32>
    %123 = arith.mulf %103, %122 : vector<8x128xf32>
    %124 = arith.select %119, %121, %123 : vector<8x128xi1>, vector<8x128xf32>
    %125 = vector.shape_cast %103 : vector<8x128xf32> to vector<8x1x128xf32>
    %126 = vector.shape_cast %108 : vector<8x128xf32> to vector<1x8x128xf32>
    %127 = vector.broadcast %125 : vector<8x1x128xf32> to vector<8x8x128xf32>
    %128 = vector.broadcast %126 : vector<1x8x128xf32> to vector<8x8x128xf32>
    %129 = arith.mulf %127, %128 : vector<8x8x128xf32>
    %130 = vector.shape_cast %124 : vector<8x128xf32> to vector<8x1x128xf32>
    %131 = vector.broadcast %130 : vector<8x1x128xf32> to vector<8x8x128xf32>
    %132 = arith.subf %129, %131 : vector<8x8x128xf32>
    %133 = math.exp %132 : vector<8x8x128xf32>
    %134 = vector.shape_cast %113 : vector<8x128xf32> to vector<1x8x128xf32>
    %135 = vector.broadcast %134 : vector<1x8x128xf32> to vector<8x8x128xf32>
    %136 = arith.mulf %133, %135 : vector<8x8x128xf32>
    %cst_27 = arith.constant dense<0.000000e+00> : vector<8x128xf32>
    %137 = vector.multi_reduction <add>, %136, %cst_27 [1] : vector<8x8x128xf32> to vector<8x128xf32>
    %cst_28 = arith.constant dense<0.000000e+00> : vector<8x128xf32>
    %138 = vector.multi_reduction <add>, %133, %cst_28 [1] : vector<8x8x128xf32> to vector<8x128xf32>
    %139 = tpu.reciprocal %138 {approx = true} : vector<8x128xf32> -> vector<8x128xf32>
    %140 = arith.mulf %137, %139 : vector<8x128xf32>
    %141 = arith.index_cast %100 : i32 to index
    %142 = arith.index_cast %8 : i32 to index
    %143 = vector.load %arg6[%141, %142] : memref<32x128xf32, #tpu.memory_space<vmem>>, vector<8x128xf32>
    tpu.vector_store %arg6[%141, %142], %140 {strides = array<i32>} : memref<32x128xf32, #tpu.memory_space<vmem>>, vector<8x128xf32>,
    %c3_i32 = arith.constant 3 : i32
    %c8_i32_29 = arith.constant 8 : i32
    %144 = arith.muli %c3_i32, %c8_i32_29 : i32
    %145 = tpu.assume_multiple %144, 8 : i32
    %146 = arith.index_cast %145 : i32 to index
    %147 = arith.index_cast %8 : i32 to index
    %148 = vector.load %arg5[%146, %147] : memref<96x128xf32, #tpu.memory_space<vmem>>, vector<8x128xf32>
    %c32_i32_30 = arith.constant 32 : i32
    %149 = arith.addi %c32_i32_30, %145 : i32
    %150 = tpu.assume_multiple %149, 8 : i32
    %151 = arith.index_cast %150 : i32 to index
    %152 = arith.index_cast %8 : i32 to index
    %153 = vector.load %arg5[%151, %152] : memref<96x128xf32, #tpu.memory_space<vmem>>, vector<8x128xf32>
    %c64_i32_31 = arith.constant 64 : i32
    %154 = arith.addi %c64_i32_31, %145 : i32
    %155 = tpu.assume_multiple %154, 8 : i32
    %156 = arith.index_cast %155 : i32 to index
    %157 = arith.index_cast %8 : i32 to index
    %158 = vector.load %arg5[%156, %157] : memref<96x128xf32, #tpu.memory_space<vmem>>, vector<8x128xf32>
    %cst_32 = arith.constant dense<0xFF800000> : vector<128xf32>
    %159 = vector.multi_reduction <maximumf>, %153, %cst_32 [0] : vector<8x128xf32> to vector<128xf32>
    %160 = vector.shape_cast %159 : vector<128xf32> to vector<1x128xf32>
    %cst_33 = arith.constant dense<0x7F800000> : vector<128xf32>
    %161 = vector.multi_reduction <minimumf>, %153, %cst_33 [0] : vector<8x128xf32> to vector<128xf32>
    %162 = vector.shape_cast %161 : vector<128xf32> to vector<1x128xf32>
    %cst_34 = arith.constant 0.000000e+00 : f32
    %163 = vector.broadcast %cst_34 : f32 to vector<8x128xf32>
    %164 = arith.cmpf oge, %148, %163 : vector<8x128xf32>
    %165 = vector.broadcast %160 : vector<1x128xf32> to vector<8x128xf32>
    %166 = arith.mulf %148, %165 : vector<8x128xf32>
    %167 = vector.broadcast %162 : vector<1x128xf32> to vector<8x128xf32>
    %168 = arith.mulf %148, %167 : vector<8x128xf32>
    %169 = arith.select %164, %166, %168 : vector<8x128xi1>, vector<8x128xf32>
    %170 = vector.shape_cast %148 : vector<8x128xf32> to vector<8x1x128xf32>
    %171 = vector.shape_cast %153 : vector<8x128xf32> to vector<1x8x128xf32>
    %172 = vector.broadcast %170 : vector<8x1x128xf32> to vector<8x8x128xf32>
    %173 = vector.broadcast %171 : vector<1x8x128xf32> to vector<8x8x128xf32>
    %174 = arith.mulf %172, %173 : vector<8x8x128xf32>
    %175 = vector.shape_cast %169 : vector<8x128xf32> to vector<8x1x128xf32>
    %176 = vector.broadcast %175 : vector<8x1x128xf32> to vector<8x8x128xf32>
    %177 = arith.subf %174, %176 : vector<8x8x128xf32>
    %178 = math.exp %177 : vector<8x8x128xf32>
    %179 = vector.shape_cast %158 : vector<8x128xf32> to vector<1x8x128xf32>
    %180 = vector.broadcast %179 : vector<1x8x128xf32> to vector<8x8x128xf32>
    %181 = arith.mulf %178, %180 : vector<8x8x128xf32>
    %cst_35 = arith.constant dense<0.000000e+00> : vector<8x128xf32>
    %182 = vector.multi_reduction <add>, %181, %cst_35 [1] : vector<8x8x128xf32> to vector<8x128xf32>
    %cst_36 = arith.constant dense<0.000000e+00> : vector<8x128xf32>
    %183 = vector.multi_reduction <add>, %178, %cst_36 [1] : vector<8x8x128xf32> to vector<8x128xf32>
    %184 = tpu.reciprocal %183 {approx = true} : vector<8x128xf32> -> vector<8x128xf32>
    %185 = arith.mulf %182, %184 : vector<8x128xf32>
    %186 = arith.index_cast %145 : i32 to index
    %187 = arith.index_cast %8 : i32 to index
    %188 = vector.load %arg6[%186, %187] : memref<32x128xf32, #tpu.memory_space<vmem>>, vector<8x128xf32>
    tpu.vector_store %arg6[%186, %187], %185 {strides = array<i32>} : memref<32x128xf32, #tpu.memory_space<vmem>>, vector<8x128xf32>,
    %c4_i32 = arith.constant 4 : i32
    %c1_i32_37 = arith.constant 1 : i32
    %c96 = arith.constant 96 : index
    %c0_38 = arith.constant 0 : index
    %189 = vector.load %arg2[%c96, %c0_38] : memref<128x96xf32, #tpu.memory_space<vmem>>, vector<32x32xf32>
    %c0_39 = arith.constant 0 : index
    %c0_40 = arith.constant 0 : index
    %190 = vector.load %arg6[%c0_39, %c0_40] : memref<32x128xf32, #tpu.memory_space<vmem>>, vector<32x128xf32>
    %cst_41 = arith.constant dense<0.000000e+00> : vector<32x128xf32>
    %191 = tpu.matmul %189, %190, %cst_41 {dimension_numbers = #tpu.dot_dimension_numbers<[1], [0], [0], [1], [0, 0, 1, 1], [], []>} : vector<32x32xf32>, vector<32x128xf32>, vector<32x128xf32> -> vector<32x128xf32>
    %c96_42 = arith.constant 96 : index
    %c0_43 = arith.constant 0 : index
    %192 = vector.load %arg3[%c96_42, %c0_43] : memref<128x1xf32, #tpu.memory_space<vmem>>, vector<32x1xf32>
    %193 = vector.broadcast %192 : vector<32x1xf32> to vector<32x128xf32>
    %194 = arith.addf %191, %193 : vector<32x128xf32>
    %c0_44 = arith.constant 0 : index
    %c0_45 = arith.constant 0 : index
    %195 = vector.load %arg4[%c0_44, %c0_45] : memref<32x128xf32, #tpu.memory_space<vmem>>, vector<32x128xf32>
    tpu.vector_store %arg4[%c0_44, %c0_45], %194 {strides = array<i32>} : memref<32x128xf32, #tpu.memory_space<vmem>>, vector<32x128xf32>,
    return
  }
  func.func @transform_0(%arg0: i32) -> (i32, i32) {
    %c0_i32 = arith.constant 0 : i32
    %c0_i32_0 = arith.constant 0 : i32
    return %c0_i32, %arg0 : i32, i32
  }
  func.func @transform_1(%arg0: i32) -> (i32, i32) {
    %c0_i32 = arith.constant 0 : i32
    %c0_i32_0 = arith.constant 0 : i32
    %c0_i32_1 = arith.constant 0 : i32
    return %c0_i32, %c0_i32_0 : i32, i32
  }
  func.func @transform_2(%arg0: i32) -> (i32, i32) {
    %c0_i32 = arith.constant 0 : i32
    %c0_i32_0 = arith.constant 0 : i32
    %c0_i32_1 = arith.constant 0 : i32
    return %c0_i32, %c0_i32_0 : i32, i32
  }
  func.func @transform_3(%arg0: i32) -> (i32, i32) {
    %c0_i32 = arith.constant 0 : i32
    %c0_i32_0 = arith.constant 0 : i32
    return %c0_i32, %arg0 : i32, i32
  }
}

</mosaic_0001>

<llo_original>
// kernel: attention_block_pallas.1
$region0: #{attention_block_pallas.1}
  #allocation0 [shape = 'u32[]', space=smem, size = 0x4, offset = 0x4, fixed_abs, tag = 'smem constant byte address 0x4 - core index']
  #allocation1 [shape = 'u32[144,128]{1,0:T(1,128)}', space=vmem, size = 0x12000, scoped, tag = 'internal scratch']
  #allocation2 [shape = 'f32[96,128]{1,0:T(8,128)}', space=vmem, size = 0xc000, scoped, tag = 'scratch operand']
  #allocation3 [shape = 'f32[32,128]{1,0:T(8,128)}', space=vmem, size = 0x4000, scoped, tag = 'scratch operand']
  %s0 = inlined_call_operand.vmem [shape: f32[96,128], index: 0, kind: input, shape index: {}]
  %s1 = inlined_call_operand.vmem [shape: f32[128,96], index: 1, kind: input, shape index: {}]
  %s2 = inlined_call_operand.vmem [shape: f32[128,1], index: 2, kind: input, shape index: {}]
  %s3 = inlined_call_operand.vmem [shape: f32[32,128], index: 3, kind: output, shape index: {}]
  %s4 = sld [smem:[#allocation0]]
  $region22: #{attention_block_pallas.1} parent=0
    _
  %s6 = ssub.s32 1, %s4
  %s7 = scalar_select 0, %s6, %s4
  // Predicated region
  $region2: #{attention_block_pallas.1} parent=0 // pred_check
    _
  $region3: #{attention_block_pallas.1} parent=0 // pred_check_branch
    %9 = sbr.rel (0) target = $region5
  $region4: #{attention_block_pallas.1} parent=0 // pred_region
    _
  $region5: #{attention_block_pallas.1} parent=0 // pred_fallthru
    _
  // Predicated region
  $region6: #{attention_block_pallas.1} parent=0 // pred_check
    _
  $region7: #{attention_block_pallas.1} parent=0 // pred_check_branch
    %11 = sbr.rel (0) target = $region9
  $region8: #{attention_block_pallas.1} parent=0 // pred_region
    _
  $region9: #{attention_block_pallas.1} parent=0 // pred_fallthru
    _
  // Predicated region
  $region10: #{attention_block_pallas.1} parent=0 // pred_check
    _
  $region11: #{attention_block_pallas.1} parent=0 // pred_check_branch
    %13 = sbr.rel (0) target = $region13
  $region12: #{attention_block_pallas.1} parent=0 // pred_region
    _
  $region13: #{attention_block_pallas.1} parent=0 // pred_fallthru
    _
  %v14 = vld [vmem:[%s1] sm:$0xff]
  %v15 = vld [vmem:[%s1 + $0x8] sm:$0xff]
  %v16 = vld [vmem:[%s1 + $0x10] sm:$0xff]
  %v17 = vld [vmem:[%s1 + $0x18] sm:$0xff]
  %v18 = vld [vmem:[%s1 + $0x20] sm:$0xff]
  %v19 = vld [vmem:[%s1 + $0x28] sm:$0xff]
  %v20 = vld [vmem:[%s1 + $0x30] sm:$0xff]
  %v21 = vld [vmem:[%s1 + $0x38] sm:$0xff]
  %v22 = vld [vmem:[%s1 + $0x40] sm:$0xff]
  %v23 = vld [vmem:[%s1 + $0x48] sm:$0xff]
  %v24 = vld [vmem:[%s1 + $0x50] sm:$0xff]
  %v25 = vld [vmem:[%s1 + $0x58] sm:$0xff]
  %v26 = vld [vmem:[%s0] sm:$0xff]
  %v27 = vld [vmem:[%s0 + $0x8] sm:$0xff]
  %v28 = vld [vmem:[%s0 + $0x10] sm:$0xff]
  %v29 = vld [vmem:[%s0 + $0x18] sm:$0xff]
  %v30 = vld [vmem:[%s0 + $0x20] sm:$0xff]
  %v31 = vld [vmem:[%s0 + $0x28] sm:$0xff]
  %v32 = vld [vmem:[%s0 + $0x30] sm:$0xff]
  %v33 = vld [vmem:[%s0 + $0x38] sm:$0xff]
  %v34 = vld [vmem:[%s0 + $0x40] sm:$0xff]
  %v35 = vld [vmem:[%s0 + $0x48] sm:$0xff]
  %v36 = vld [vmem:[%s0 + $0x50] sm:$0xff]
  %v37 = vld [vmem:[%s0 + $0x58] sm:$0xff]
  %v38 = vld [vmem:[%s2] sm:$0xff]
  %v39 = vld [vmem:[%s2 + $0x8] sm:$0xff]
  %v40 = vld [vmem:[%s2 + $0x10] sm:$0xff]
  %v41 = vld [vmem:[%s2 + $0x18] sm:$0xff]
  %v42 = vld [vmem:[%s2 + $0x20] sm:$0xff]
  %v43 = vld [vmem:[%s2 + $0x28] sm:$0xff]
  %v44 = vld [vmem:[%s2 + $0x30] sm:$0xff]
  %v45 = vld [vmem:[%s2 + $0x38] sm:$0xff]
  %v46 = vld [vmem:[%s2 + $0x40] sm:$0xff]
  %v47 = vld [vmem:[%s2 + $0x48] sm:$0xff]
  %v48 = vld [vmem:[%s2 + $0x50] sm:$0xff]
  %v49 = vld [vmem:[%s2 + $0x58] sm:$0xff]
  %51 = vset.pattern.permute.xlu0 0
  %52 = vperm.xlu0 %51, %v38
  %v53 = vpop.permute.xlu0 %52
  %56 = vset.pattern.permute.xlu0 0
  %57 = vperm.xlu0 %56, %v39
  %v58 = vpop.permute.xlu0 %57
  %61 = vset.pattern.permute.xlu0 0
  %62 = vperm.xlu0 %61, %v40
  %v63 = vpop.permute.xlu0 %62
  %66 = vset.pattern.permute.xlu0 0
  %67 = vperm.xlu0 %66, %v41
  %v68 = vpop.permute.xlu0 %67
  %71 = vset.pattern.permute.xlu0 0
  %72 = vperm.xlu0 %71, %v42
  %v73 = vpop.permute.xlu0 %72
  %76 = vset.pattern.permute.xlu0 0
  %77 = vperm.xlu0 %76, %v43
  %v78 = vpop.permute.xlu0 %77
  %81 = vset.pattern.permute.xlu0 0
  %82 = vperm.xlu0 %81, %v44
  %v83 = vpop.permute.xlu0 %82
  %86 = vset.pattern.permute.xlu0 0
  %87 = vperm.xlu0 %86, %v45
  %v88 = vpop.permute.xlu0 %87
  %91 = vset.pattern.permute.xlu0 0
  %92 = vperm.xlu0 %91, %v46
  %v93 = vpop.permute.xlu0 %92
  %96 = vset.pattern.permute.xlu0 0
  %97 = vperm.xlu0 %96, %v47
  %v98 = vpop.permute.xlu0 %97
  %101 = vset.pattern.permute.xlu0 0
  %102 = vperm.xlu0 %101, %v48
  %v103 = vpop.permute.xlu0 %102
  %106 = vset.pattern.permute.xlu0 0
  %107 = vperm.xlu0 %106, %v49
  %v108 = vpop.permute.xlu0 %107
  %vm110 = vcmask 785408
  %v112 = vsel %vm110, %v14, 0
  %v115 = vsel %vm110, %v15, 0
  %v118 = vsel %vm110, %v16, 0
  %v121 = vsel %vm110, %v17, 0
  %v124 = vsel %vm110, %v18, 0
  %v127 = vsel %vm110, %v19, 0
  %v130 = vsel %vm110, %v20, 0
  %v133 = vsel %vm110, %v21, 0
  %v136 = vsel %vm110, %v22, 0
  %v139 = vsel %vm110, %v23, 0
  %v142 = vsel %vm110, %v24, 0
  %v145 = vsel %vm110, %v25, 0
  %147 = vmatprep.subr.mxu0 0.0
  %148 = vmatpush1.msra.mxu0 %v26
  %149 = vmatprep.subr.mxu0 0.0
  %150 = vmatpush1.msra.mxu0 %v27
  %151 = vmatprep.subr.mxu0 0.0
  %152 = vmatpush1.msra.mxu0 %v28
  %153 = vmatprep.subr.mxu0 0.0
  %154 = vmatpush1.msra.mxu0 %v29
  %155 = vmatprep.subr.mxu0 0.0
  %156 = vmatpush1.msra.mxu0 %v30
  %157 = vmatprep.subr.mxu0 0.0
  %158 = vmatpush1.msra.mxu0 %v31
  %159 = vmatprep.subr.mxu0 0.0
  %160 = vmatpush1.msra.mxu0 %v32
  %161 = vmatprep.subr.mxu0 0.0
  %162 = vmatpush1.msra.mxu0 %v33
  %163 = vmatprep.subr.mxu0 0.0
  %164 = vmatpush1.msra.mxu0 %v34
  %165 = vmatprep.subr.mxu0 0.0
  %166 = vmatpush1.msra.mxu0 %v35
  %167 = vmatprep.subr.mxu0 0.0
  %168 = vmatpush1.msra.mxu0 %v36
  %169 = vmatprep.subr.mxu0 0.0
  %170 = vmatpush1.msra.mxu0 %v37
  %171 = vmatprep.subr.mxu0 0.0
  %172 = vmatpush1.msra.mxu0 0.0
  %173 = vmatprep.subr.mxu0 0.0
  %174 = vmatpush1.msra.mxu0 0.0
  %175 = vmatprep.subr.mxu0 0.0
  %176 = vmatpush1.msra.mxu0 0.0
  %177 = vmatprep.subr.mxu0 0.0
  %178 = vmatpush1.msra.mxu0 0.0
  %179 = vmatprep.subr.mxu0 0.0
  %180 = vmatpush1.msra.mxu0 0.0
  %181 = vmatprep.subr.mxu0 0.0
  %182 = vmatpush1.msra.mxu0 0.0
  %183 = vmatprep.subr.mxu0 0.0
  %184 = vmatpush1.msra.mxu0 0.0
  %185 = vmatprep.subr.mxu0 0.0
  %186 = vmatpush1.msra.mxu0 0.0
  %187 = vmatprep.subr.mxu0 0.0
  %188 = vmatpush1.msra.mxu0 0.0
  %189 = vmatprep.subr.mxu0 0.0
  %190 = vmatpush1.msra.mxu0 0.0
  %191 = vmatprep.subr.mxu0 0.0
  %192 = vmatpush1.msra.mxu0 0.0
  %193 = vmatprep.subr.mxu0 0.0
  %194 = vmatpush1.msra.mxu0 0.0
  %195 = vmatprep.subr.mxu0 0.0
  %196 = vmatpush1.msra.mxu0 0.0
  %197 = vmatprep.subr.mxu0 0.0
  %198 = vmatpush1.msra.mxu0 0.0
  %199 = vmatprep.subr.mxu0 0.0
  %200 = vmatpush1.msra.mxu0 0.0
  %201 = vmatprep.subr.mxu0 0.0
  %202 = vmatpush1.msra.mxu0 0.0
  %203 = vmatprep.subr.mxu0 0.0
  %204 = vmatpush1.msra.mxu0 0.0
  %205 = vmatprep.subr.mxu0 0.0
  %206 = vmatpush1.msra.mxu0 0.0
  %207 = vmatprep.subr.mxu0 0.0
  %208 = vmatpush1.msra.mxu0 0.0
  %209 = vmatprep.subr.mxu0 0.0
  %210 = vmatpush1.msra.mxu0 0.0
  %211 = vmatprep.mubr.f32.mxu0 0.0
  %212 = vmatmul.mubr.f32.gmra.mrb[0].mxu0 %v112
  %v213 = vpop.f32.mrb[0].mxu0
  %v214 = vadd.f32 %v53, %v213
  %v215 = vpop.f32.mrb[0].mxu0
  %216 = vmatprep.mubr.f32.mxu0 0.0
  %217 = vmatmul.mubr.f32.gmra.mrb[0].mxu0 %v115
  %v218 = vpop.f32.mrb[0].mxu0
  %v219 = vadd.f32 %v58, %v218
  %v220 = vpop.f32.mrb[0].mxu0
  %221 = vmatprep.mubr.f32.mxu0 0.0
  %222 = vmatmul.mubr.f32.gmra.mrb[0].mxu0 %v118
  %v223 = vpop.f32.mrb[0].mxu0
  %v224 = vadd.f32 %v63, %v223
  %v225 = vpop.f32.mrb[0].mxu0
  %226 = vmatprep.mubr.f32.mxu0 0.0
  %227 = vmatmul.mubr.f32.gmra.mrb[0].mxu0 %v121
  %v228 = vpop.f32.mrb[0].mxu0
  %v229 = vadd.f32 %v68, %v228
  %v230 = vpop.f32.mrb[0].mxu0
  %231 = vmatprep.mubr.f32.mxu0 0.0
  %232 = vmatmul.mubr.f32.gmra.mrb[0].mxu0 %v124
  %v233 = vpop.f32.mrb[0].mxu0
  %v234 = vadd.f32 %v73, %v233
  %v235 = vpop.f32.mrb[0].mxu0
  %236 = vmatprep.mubr.f32.mxu0 0.0
  %237 = vmatmul.mubr.f32.gmra.mrb[0].mxu0 %v127
  %v238 = vpop.f32.mrb[0].mxu0
  %v239 = vadd.f32 %v78, %v238
  %v240 = vpop.f32.mrb[0].mxu0
  %241 = vmatprep.mubr.f32.mxu0 0.0
  %242 = vmatmul.mubr.f32.gmra.mrb[0].mxu0 %v130
  %v243 = vpop.f32.mrb[0].mxu0
  %v244 = vadd.f32 %v83, %v243
  %v245 = vpop.f32.mrb[0].mxu0
  %246 = vmatprep.mubr.f32.mxu0 0.0
  %247 = vmatmul.mubr.f32.gmra.mrb[0].mxu0 %v133
  %v248 = vpop.f32.mrb[0].mxu0
  %v249 = vadd.f32 %v88, %v248
  %v250 = vpop.f32.mrb[0].mxu0
  %251 = vmatprep.mubr.f32.mxu0 0.0
  %252 = vmatmul.mubr.f32.gmra.mrb[0].mxu0 %v136
  %v253 = vpop.f32.mrb[0].mxu0
  %v254 = vadd.f32 %v93, %v253
  %v255 = vpop.f32.mrb[0].mxu0
  %256 = vmatprep.mubr.f32.mxu0 0.0
  %257 = vmatmul.mubr.f32.gmra.mrb[0].mxu0 %v139
  %v258 = vpop.f32.mrb[0].mxu0
  %v259 = vadd.f32 %v98, %v258
  %v260 = vpop.f32.mrb[0].mxu0
  %261 = vmatprep.mubr.f32.mxu0 0.0
  %262 = vmatmul.mubr.f32.gmra.mrb[0].mxu0 %v142
  %v263 = vpop.f32.mrb[0].mxu0
  %v264 = vadd.f32 %v103, %v263
  %v265 = vpop.f32.mrb[0].mxu0
  %266 = vmatprep.mubr.f32.mxu0 0.0
  %267 = vmatmul.mubr.f32.gmra.mrb[0].mxu0 %v145
  %v268 = vpop.f32.mrb[0].mxu0
  %v269 = vadd.f32 %v108, %v268
  %v270 = vpop.f32.mrb[0].mxu0
  %271 = vdwg.mxu0
  %272 = vst [vmem:[#allocation2] sm:$0xff] %v214
  %273 = vst [vmem:[#allocation2 + $0x8] sm:$0xff] %v219
  %274 = vst [vmem:[#allocation2 + $0x10] sm:$0xff] %v224
  %275 = vst [vmem:[#allocation2 + $0x18] sm:$0xff] %v229
  %276 = vst [vmem:[#allocation2 + $0x20] sm:$0xff] %v234
  %277 = vst [vmem:[#allocation2 + $0x28] sm:$0xff] %v239
  %278 = vst [vmem:[#allocation2 + $0x30] sm:$0xff] %v244
  %279 = vst [vmem:[#allocation2 + $0x38] sm:$0xff] %v249
  %280 = vst [vmem:[#allocation2 + $0x40] sm:$0xff] %v254
  %281 = vst [vmem:[#allocation2 + $0x48] sm:$0xff] %v259
  %282 = vst [vmem:[#allocation2 + $0x50] sm:$0xff] %v264
  %283 = vst [vmem:[#allocation2 + $0x58] sm:$0xff] %v269
  %s284 = sadd.s32 0, 0
  %s285 = scalar_lea.vmem [#allocation2], %s284
  %v286 = vld [vmem:[%s285] sm:$0xff]
  %s287 = sadd.s32 0, 32
  %s288 = sadd.s32 0, %s287
  %s289 = scalar_lea.vmem [#allocation2], %s288
  %v290 = vld [vmem:[%s289] sm:$0xff]
  %s291 = sadd.s32 0, 64
  %s292 = sadd.s32 0, %s291
  %s293 = scalar_lea.vmem [#allocation2], %s292
  %v294 = vld [vmem:[%s293] sm:$0xff]
  %v295 = vrot.slane %v290, 4
  %v296 = vmax.f32 %v290, %v295
  %v297 = vrot.slane %v296, 2
  %v298 = vmax.f32 %v296, %v297
  %v299 = vrot.slane %v298, 1
  %v300 = vmax.f32 %v298, %v299
  %v301 = vrot.slane %v290, 4
  %v302 = vmin.f32 %v290, %v301
  %v303 = vrot.slane %v302, 2
  %v304 = vmin.f32 %v302, %v303
  %v305 = vrot.slane %v304, 1
  %v306 = vmin.f32 %v304, %v305
  %vm307 = vcmp.ge.f32.partialorder %v286, 0.0
  %v308 = vmul.f32 %v286, %v300
  %v309 = vmul.f32 %v286, %v306
  %v310 = vsel %vm307, %v308, %v309
  %v312 = vcombine.high %v286, %v286
  %v314 = vunpack.c.l.s4 1966171168
  %v315 = vunpack.c.0.s8 %v314
  %v316 = vlaneseq
  %v317 = vshrl.u32 %v316, 7
  %v318 = vsub.s32 %v315, %v317
  %v319 = vrot.slane %v286, %v318
  %v321 = vunpack.c.l.s4 1966171168
  %v322 = vunpack.c.0.s8 %v321
  %v323 = vlaneseq
  %v324 = vshrl.u32 %v323, 7
  %v325 = vsub.s32 %v322, %v324
  %v326 = vrot.slane %v312, %v325
  %v327 = vcombine.high %v319, %v319
  %v328 = vcombine.high %v326, %v326
  %v330 = vunpack.c.l.s4 1966171168
  %v331 = vunpack.c.0.s8 %v330
  %v332 = vlaneseq
  %v333 = vshrl.u32 %v332, 7
  %v334 = vsub.s32 %v331, %v333
  %v335 = vrot.slane %v319, %v334
  %v337 = vunpack.c.l.s4 1966171168
  %v338 = vunpack.c.0.s8 %v337
  %v339 = vlaneseq
  %v340 = vshrl.u32 %v339, 7
  %v341 = vsub.s32 %v338, %v340
  %v342 = vrot.slane %v326, %v341
  %v344 = vunpack.c.l.s4 1966171168
  %v345 = vunpack.c.0.s8 %v344
  %v346 = vlaneseq
  %v347 = vshrl.u32 %v346, 7
  %v348 = vsub.s32 %v345, %v347
  %v349 = vrot.slane %v327, %v348
  %v351 = vunpack.c.l.s4 1966171168
  %v352 = vunpack.c.0.s8 %v351
  %v353 = vlaneseq
  %v354 = vshrl.u32 %v353, 7
  %v355 = vsub.s32 %v352, %v354
  %v356 = vrot.slane %v328, %v355
  %v357 = vcombine.high %v335, %v335
  %v358 = vcombine.high %v342, %v342
  %v359 = vcombine.high %v349, %v349
  %v360 = vcombine.high %v356, %v356
  %v361 = vlaneseq
  %v362 = vshrl.u32 %v361, 7
  %v363 = vsub.s32 0, %v362
  %v364 = vrot.slane %v335, %v363
  %v365 = vlaneseq
  %v366 = vshrl.u32 %v365, 7
  %v367 = vsub.s32 0, %v366
  %v368 = vrot.slane %v349, %v367
  %v369 = vlaneseq
  %v370 = vshrl.u32 %v369, 7
  %v371 = vsub.s32 0, %v370
  %v372 = vrot.slane %v357, %v371
  %v373 = vlaneseq
  %v374 = vshrl.u32 %v373, 7
  %v375 = vsub.s32 0, %v374
  %v376 = vrot.slane %v359, %v375
  %v377 = vlaneseq
  %v378 = vshrl.u32 %v377, 7
  %v379 = vsub.s32 0, %v378
  %v380 = vrot.slane %v342, %v379
  %v381 = vlaneseq
  %v382 = vshrl.u32 %v381, 7
  %v383 = vsub.s32 0, %v382
  %v384 = vrot.slane %v356, %v383
  %v385 = vlaneseq
  %v386 = vshrl.u32 %v385, 7
  %v387 = vsub.s32 0, %v386
  %v388 = vrot.slane %v358, %v387
  %v389 = vlaneseq
  %v390 = vshrl.u32 %v389, 7
  %v391 = vsub.s32 0, %v390
  %v392 = vrot.slane %v360, %v391
  %v401 = vmul.f32 %v364, %v290
  %v402 = vmul.f32 %v368, %v290
  %v403 = vmul.f32 %v372, %v290
  %v404 = vmul.f32 %v376, %v290
  %v405 = vmul.f32 %v380, %v290
  %v406 = vmul.f32 %v384, %v290
  %v407 = vmul.f32 %v388, %v290
  %v408 = vmul.f32 %v392, %v290
  %v410 = vcombine.high %v310, %v310
  %v412 = vunpack.c.l.s4 1966171168
  %v413 = vunpack.c.0.s8 %v412
  %v414 = vlaneseq
  %v415 = vshrl.u32 %v414, 7
  %v416 = vsub.s32 %v413, %v415
  %v417 = vrot.slane %v310, %v416
  %v419 = vunpack.c.l.s4 1966171168
  %v420 = vunpack.c.0.s8 %v419
  %v421 = vlaneseq
  %v422 = vshrl.u32 %v421, 7
  %v423 = vsub.s32 %v420, %v422
  %v424 = vrot.slane %v410, %v423
  %v425 = vcombine.high %v417, %v417
  %v426 = vcombine.high %v424, %v424
  %v428 = vunpack.c.l.s4 1966171168
  %v429 = vunpack.c.0.s8 %v428
  %v430 = vlaneseq
  %v431 = vshrl.u32 %v430, 7
  %v432 = vsub.s32 %v429, %v431
  %v433 = vrot.slane %v417, %v432
  %v435 = vunpack.c.l.s4 1966171168
  %v436 = vunpack.c.0.s8 %v435
  %v437 = vlaneseq
  %v438 = vshrl.u32 %v437, 7
  %v439 = vsub.s32 %v436, %v438
  %v440 = vrot.slane %v424, %v439
  %v442 = vunpack.c.l.s4 1966171168
  %v443 = vunpack.c.0.s8 %v442
  %v444 = vlaneseq
  %v445 = vshrl.u32 %v444, 7
  %v446 = vsub.s32 %v443, %v445
  %v447 = vrot.slane %v425, %v446
  %v449 = vunpack.c.l.s4 1966171168
  %v450 = vunpack.c.0.s8 %v449
  %v451 = vlaneseq
  %v452 = vshrl.u32 %v451, 7
  %v453 = vsub.s32 %v450, %v452
  %v454 = vrot.slane %v426, %v453
  %v455 = vcombine.high %v433, %v433
  %v456 = vcombine.high %v440, %v440
  %v457 = vcombine.high %v447, %v447
  %v458 = vcombine.high %v454, %v454
  %v459 = vlaneseq
  %v460 = vshrl.u32 %v459, 7
  %v461 = vsub.s32 0, %v460
  %v462 = vrot.slane %v433, %v461
  %v463 = vlaneseq
  %v464 = vshrl.u32 %v463, 7
  %v465 = vsub.s32 0, %v464
  %v466 = vrot.slane %v447, %v465
  %v467 = vlaneseq
  %v468 = vshrl.u32 %v467, 7
  %v469 = vsub.s32 0, %v468
  %v470 = vrot.slane %v455, %v469
  %v471 = vlaneseq
  %v472 = vshrl.u32 %v471, 7
  %v473 = vsub.s32 0, %v472
  %v474 = vrot.slane %v457, %v473
  %v475 = vlaneseq
  %v476 = vshrl.u32 %v475, 7
  %v477 = vsub.s32 0, %v476
  %v478 = vrot.slane %v440, %v477
  %v479 = vlaneseq
  %v480 = vshrl.u32 %v479, 7
  %v481 = vsub.s32 0, %v480
  %v482 = vrot.slane %v454, %v481
  %v483 = vlaneseq
  %v484 = vshrl.u32 %v483, 7
  %v485 = vsub.s32 0, %v484
  %v486 = vrot.slane %v456, %v485
  %v487 = vlaneseq
  %v488 = vshrl.u32 %v487, 7
  %v489 = vsub.s32 0, %v488
  %v490 = vrot.slane %v458, %v489
  %v499 = vsub.f32 %v401, %v462
  %v500 = vsub.f32 %v402, %v466
  %v501 = vsub.f32 %v403, %v470
  %v502 = vsub.f32 %v404, %v474
  %v503 = vsub.f32 %v405, %v478
  %v504 = vsub.f32 %v406, %v482
  %v505 = vsub.f32 %v407, %v486
  %v506 = vsub.f32 %v408, %v490
  %v507 = vmul.f32 %v499, 1.442695
  %v508 = vpow.pop %v507
  %v509 = vmul.f32 %v500, 1.442695
  %v510 = vpow.pop %v509
  %v511 = vmul.f32 %v501, 1.442695
  %v512 = vpow.pop %v511
  %v513 = vmul.f32 %v502, 1.442695
  %v514 = vpow.pop %v513
  %v515 = vmul.f32 %v503, 1.442695
  %v516 = vpow.pop %v515
  %v517 = vmul.f32 %v504, 1.442695
  %v518 = vpow.pop %v517
  %v519 = vmul.f32 %v505, 1.442695
  %v520 = vpow.pop %v519
  %v521 = vmul.f32 %v506, 1.442695
  %v522 = vpow.pop %v521
  %v523 = vmul.f32 %v508, %v294
  %v524 = vmul.f32 %v510, %v294
  %v525 = vmul.f32 %v512, %v294
  %v526 = vmul.f32 %v514, %v294
  %v527 = vmul.f32 %v516, %v294
  %v528 = vmul.f32 %v518, %v294
  %v529 = vmul.f32 %v520, %v294
  %v530 = vmul.f32 %v522, %v294
  %v531 = vrot.slane %v523, 4
  %v532 = vadd.f32 %v523, %v531
  %v533 = vrot.slane %v532, 2
  %v534 = vadd.f32 %v532, %v533
  %v535 = vrot.slane %v534, 1
  %v536 = vadd.f32 %v534, %v535
  %v537 = vrot.slane %v524, 4
  %v538 = vadd.f32 %v524, %v537
  %v539 = vrot.slane %v538, 2
  %v540 = vadd.f32 %v538, %v539
  %v541 = vrot.slane %v540, 1
  %v542 = vadd.f32 %v540, %v541
  %v543 = vrot.slane %v525, 4
  %v544 = vadd.f32 %v525, %v543
  %v545 = vrot.slane %v544, 2
  %v546 = vadd.f32 %v544, %v545
  %v547 = vrot.slane %v546, 1
  %v548 = vadd.f32 %v546, %v547
  %v549 = vrot.slane %v526, 4
  %v550 = vadd.f32 %v526, %v549
  %v551 = vrot.slane %v550, 2
  %v552 = vadd.f32 %v550, %v551
  %v553 = vrot.slane %v552, 1
  %v554 = vadd.f32 %v552, %v553
  %v555 = vrot.slane %v527, 4
  %v556 = vadd.f32 %v527, %v555
  %v557 = vrot.slane %v556, 2
  %v558 = vadd.f32 %v556, %v557
  %v559 = vrot.slane %v558, 1
  %v560 = vadd.f32 %v558, %v559
  %v561 = vrot.slane %v528, 4
  %v562 = vadd.f32 %v528, %v561
  %v563 = vrot.slane %v562, 2
  %v564 = vadd.f32 %v562, %v563
  %v565 = vrot.slane %v564, 1
  %v566 = vadd.f32 %v564, %v565
  %v567 = vrot.slane %v529, 4
  %v568 = vadd.f32 %v529, %v567
  %v569 = vrot.slane %v568, 2
  %v570 = vadd.f32 %v568, %v569
  %v571 = vrot.slane %v570, 1
  %v572 = vadd.f32 %v570, %v571
  %v573 = vrot.slane %v530, 4
  %v574 = vadd.f32 %v530, %v573
  %v575 = vrot.slane %v574, 2
  %v576 = vadd.f32 %v574, %v575
  %v577 = vrot.slane %v576, 1
  %v578 = vadd.f32 %v576, %v577
  %v579 = vrot.slane %v508, 4
  %v580 = vadd.f32 %v508, %v579
  %v581 = vrot.slane %v580, 2
  %v582 = vadd.f32 %v580, %v581
  %v583 = vrot.slane %v582, 1
  %v584 = vadd.f32 %v582, %v583
  %v585 = vrot.slane %v510, 4
  %v586 = vadd.f32 %v510, %v585
  %v587 = vrot.slane %v586, 2
  %v588 = vadd.f32 %v586, %v587
  %v589 = vrot.slane %v588, 1
  %v590 = vadd.f32 %v588, %v589
  %v591 = vrot.slane %v512, 4
  %v592 = vadd.f32 %v512, %v591
  %v593 = vrot.slane %v592, 2
  %v594 = vadd.f32 %v592, %v593
  %v595 = vrot.slane %v594, 1
  %v596 = vadd.f32 %v594, %v595
  %v597 = vrot.slane %v514, 4
  %v598 = vadd.f32 %v514, %v597
  %v599 = vrot.slane %v598, 2
  %v600 = vadd.f32 %v598, %v599
  %v601 = vrot.slane %v600, 1
  %v602 = vadd.f32 %v600, %v601
  %v603 = vrot.slane %v516, 4
  %v604 = vadd.f32 %v516, %v603
  %v605 = vrot.slane %v604, 2
  %v606 = vadd.f32 %v604, %v605
  %v607 = vrot.slane %v606, 1
  %v608 = vadd.f32 %v606, %v607
  %v609 = vrot.slane %v518, 4
  %v610 = vadd.f32 %v518, %v609
  %v611 = vrot.slane %v610, 2
  %v612 = vadd.f32 %v610, %v611
  %v613 = vrot.slane %v612, 1
  %v614 = vadd.f32 %v612, %v613
  %v615 = vrot.slane %v520, 4
  %v616 = vadd.f32 %v520, %v615
  %v617 = vrot.slane %v616, 2
  %v618 = vadd.f32 %v616, %v617
  %v619 = vrot.slane %v618, 1
  %v620 = vadd.f32 %v618, %v619
  %v621 = vrot.slane %v522, 4
  %v622 = vadd.f32 %v522, %v621
  %v623 = vrot.slane %v622, 2
  %v624 = vadd.f32 %v622, %v623
  %v625 = vrot.slane %v624, 1
  %v626 = vadd.f32 %v624, %v625
  %v627 = vrcp.pop %v584
  %v628 = vrcp.pop %v590
  %v629 = vrcp.pop %v596
  %v630 = vrcp.pop %v602
  %v631 = vrcp.pop %v608
  %v632 = vrcp.pop %v614
  %v633 = vrcp.pop %v620
  %v634 = vrcp.pop %v626
  %v635 = vmul.f32 %v536, %v627
  %v636 = vmul.f32 %v542, %v628
  %v637 = vmul.f32 %v548, %v629
  %v638 = vmul.f32 %v554, %v630
  %v639 = vmul.f32 %v560, %v631
  %v640 = vmul.f32 %v566, %v632
  %v641 = vmul.f32 %v572, %v633
  %v642 = vmul.f32 %v578, %v634
  %vm651 = vcmask 1041409
  %v652 = vsel %vm651, %v636, %v635
  %vm653 = vcmask 1042434
  %v654 = vsel %vm653, %v637, %v652
  %vm655 = vcmask 1043459
  %v656 = vsel %vm655, %v638, %v654
  %vm657 = vcmask 1044484
  %v658 = vsel %vm657, %v639, %v656
  %vm659 = vcmask 1045509
  %v660 = vsel %vm659, %v640, %v658
  %vm661 = vcmask 1046534
  %v662 = vsel %vm661, %v641, %v660
  %vm663 = vcmask 1047559
  %v664 = vsel %vm663, %v642, %v662
  %s666 = scalar_lea.vmem [#allocation3], %s284
  %667 = vst [vmem:[%s666] sm:$0xff] %v664
  %s668 = sadd.s32 0, 8
  %s669 = scalar_lea.vmem [#allocation2], %s668
  %v670 = vld [vmem:[%s669] sm:$0xff]
  %s671 = sadd.s32 8, 32
  %s672 = sadd.s32 0, %s671
  %s673 = scalar_lea.vmem [#allocation2], %s672
  %v674 = vld [vmem:[%s673] sm:$0xff]
  %s675 = sadd.s32 8, 64
  %s676 = sadd.s32 0, %s675
  %s677 = scalar_lea.vmem [#allocation2], %s676
  %v678 = vld [vmem:[%s677] sm:$0xff]
  %v679 = vrot.slane %v674, 4
  %v680 = vmax.f32 %v674, %v679
  %v681 = vrot.slane %v680, 2
  %v682 = vmax.f32 %v680, %v681
  %v683 = vrot.slane %v682, 1
  %v684 = vmax.f32 %v682, %v683
  %v685 = vrot.slane %v674, 4
  %v686 = vmin.f32 %v674, %v685
  %v687 = vrot.slane %v686, 2
  %v688 = vmin.f32 %v686, %v687
  %v689 = vrot.slane %v688, 1
  %v690 = vmin.f32 %v688, %v689
  %vm691 = vcmp.ge.f32.partialorder %v670, 0.0
  %v692 = vmul.f32 %v670, %v684
  %v693 = vmul.f32 %v670, %v690
  %v694 = vsel %vm691, %v692, %v693
  %v696 = vcombine.high %v670, %v670
  %v698 = vunpack.c.l.s4 1966171168
  %v699 = vunpack.c.0.s8 %v698
  %v700 = vlaneseq
  %v701 = vshrl.u32 %v700, 7
  %v702 = vsub.s32 %v699, %v701
  %v703 = vrot.slane %v670, %v702
  %v705 = vunpack.c.l.s4 1966171168
  %v706 = vunpack.c.0.s8 %v705
  %v707 = vlaneseq
  %v708 = vshrl.u32 %v707, 7
  %v709 = vsub.s32 %v706, %v708
  %v710 = vrot.slane %v696, %v709
  %v711 = vcombine.high %v703, %v703
  %v712 = vcombine.high %v710, %v710
  %v714 = vunpack.c.l.s4 1966171168
  %v715 = vunpack.c.0.s8 %v714
  %v716 = vlaneseq
  %v717 = vshrl.u32 %v716, 7
  %v718 = vsub.s32 %v715, %v717
  %v719 = vrot.slane %v703, %v718
  %v721 = vunpack.c.l.s4 1966171168
  %v722 = vunpack.c.0.s8 %v721
  %v723 = vlaneseq
  %v724 = vshrl.u32 %v723, 7
  %v725 = vsub.s32 %v722, %v724
  %v726 = vrot.slane %v710, %v725
  %v728 = vunpack.c.l.s4 1966171168
  %v729 = vunpack.c.0.s8 %v728
  %v730 = vlaneseq
  %v731 = vshrl.u32 %v730, 7
  %v732 = vsub.s32 %v729, %v731
  %v733 = vrot.slane %v711, %v732
  %v735 = vunpack.c.l.s4 1966171168
  %v736 = vunpack.c.0.s8 %v735
  %v737 = vlaneseq
  %v738 = vshrl.u32 %v737, 7
  %v739 = vsub.s32 %v736, %v738
  %v740 = vrot.slane %v712, %v739
  %v741 = vcombine.high %v719, %v719
  %v742 = vcombine.high %v726, %v726
  %v743 = vcombine.high %v733, %v733
  %v744 = vcombine.high %v740, %v740
  %v745 = vlaneseq
  %v746 = vshrl.u32 %v745, 7
  %v747 = vsub.s32 0, %v746
  %v748 = vrot.slane %v719, %v747
  %v749 = vlaneseq
  %v750 = vshrl.u32 %v749, 7
  %v751 = vsub.s32 0, %v750
  %v752 = vrot.slane %v733, %v751
  %v753 = vlaneseq
  %v754 = vshrl.u32 %v753, 7
  %v755 = vsub.s32 0, %v754
  %v756 = vrot.slane %v741, %v755
  %v757 = vlaneseq
  %v758 = vshrl.u32 %v757, 7
  %v759 = vsub.s32 0, %v758
  %v760 = vrot.slane %v743, %v759
  %v761 = vlaneseq
  %v762 = vshrl.u32 %v761, 7
  %v763 = vsub.s32 0, %v762
  %v764 = vrot.slane %v726, %v763
  %v765 = vlaneseq
  %v766 = vshrl.u32 %v765, 7
  %v767 = vsub.s32 0, %v766
  %v768 = vrot.slane %v740, %v767
  %v769 = vlaneseq
  %v770 = vshrl.u32 %v769, 7
  %v771 = vsub.s32 0, %v770
  %v772 = vrot.slane %v742, %v771
  %v773 = vlaneseq
  %v774 = vshrl.u32 %v773, 7
  %v775 = vsub.s32 0, %v774
  %v776 = vrot.slane %v744, %v775
  %v785 = vmul.f32 %v748, %v674
  %v786 = vmul.f32 %v752, %v674
  %v787 = vmul.f32 %v756, %v674
  %v788 = vmul.f32 %v760, %v674
  %v789 = vmul.f32 %v764, %v674
  %v790 = vmul.f32 %v768, %v674
  %v791 = vmul.f32 %v772, %v674
  %v792 = vmul.f32 %v776, %v674
  %v794 = vcombine.high %v694, %v694
  %v796 = vunpack.c.l.s4 1966171168
  %v797 = vunpack.c.0.s8 %v796
  %v798 = vlaneseq
  %v799 = vshrl.u32 %v798, 7
  %v800 = vsub.s32 %v797, %v799
  %v801 = vrot.slane %v694, %v800
  %v803 = vunpack.c.l.s4 1966171168
  %v804 = vunpack.c.0.s8 %v803
  %v805 = vlaneseq
  %v806 = vshrl.u32 %v805, 7
  %v807 = vsub.s32 %v804, %v806
  %v808 = vrot.slane %v794, %v807
  %v809 = vcombine.high %v801, %v801
  %v810 = vcombine.high %v808, %v808
  %v812 = vunpack.c.l.s4 1966171168
  %v813 = vunpack.c.0.s8 %v812
  %v814 = vlaneseq
  %v815 = vshrl.u32 %v814, 7
  %v816 = vsub.s32 %v813, %v815
  %v817 = vrot.slane %v801, %v816
  %v819 = vunpack.c.l.s4 1966171168
  %v820 = vunpack.c.0.s8 %v819
  %v821 = vlaneseq
  %v822 = vshrl.u32 %v821, 7
  %v823 = vsub.s32 %v820, %v822
  %v824 = vrot.slane %v808, %v823
  %v826 = vunpack.c.l.s4 1966171168
  %v827 = vunpack.c.0.s8 %v826
  %v828 = vlaneseq
  %v829 = vshrl.u32 %v828, 7
  %v830 = vsub.s32 %v827, %v829
  %v831 = vrot.slane %v809, %v830
  %v833 = vunpack.c.l.s4 1966171168
  %v834 = vunpack.c.0.s8 %v833
  %v835 = vlaneseq
  %v836 = vshrl.u32 %v835, 7
  %v837 = vsub.s32 %v834, %v836
  %v838 = vrot.slane %v810, %v837
  %v839 = vcombine.high %v817, %v817
  %v840 = vcombine.high %v824, %v824
  %v841 = vcombine.high %v831, %v831
  %v842 = vcombine.high %v838, %v838
  %v843 = vlaneseq
  %v844 = vshrl.u32 %v843, 7
  %v845 = vsub.s32 0, %v844
  %v846 = vrot.slane %v817, %v845
  %v847 = vlaneseq
  %v848 = vshrl.u32 %v847, 7
  %v849 = vsub.s32 0, %v848
  %v850 = vrot.slane %v831, %v849
  %v851 = vlaneseq
  %v852 = vshrl.u32 %v851, 7
  %v853 = vsub.s32 0, %v852
  %v854 = vrot.slane %v839, %v853
  %v855 = vlaneseq
  %v856 = vshrl.u32 %v855, 7
  %v857 = vsub.s32 0, %v856
  %v858 = vrot.slane %v841, %v857
  %v859 = vlaneseq
  %v860 = vshrl.u32 %v859, 7
  %v861 = vsub.s32 0, %v860
  %v862 = vrot.slane %v824, %v861
  %v863 = vlaneseq
  %v864 = vshrl.u32 %v863, 7
  %v865 = vsub.s32 0, %v864
  %v866 = vrot.slane %v838, %v865
  %v867 = vlaneseq
  %v868 = vshrl.u32 %v867, 7
  %v869 = vsub.s32 0, %v868
  %v870 = vrot.slane %v840, %v869
  %v871 = vlaneseq
  %v872 = vshrl.u32 %v871, 7
  %v873 = vsub.s32 0, %v872
  %v874 = vrot.slane %v842, %v873
  %v883 = vsub.f32 %v785, %v846
  %v884 = vsub.f32 %v786, %v850
  %v885 = vsub.f32 %v787, %v854
  %v886 = vsub.f32 %v788, %v858
  %v887 = vsub.f32 %v789, %v862
  %v888 = vsub.f32 %v790, %v866
  %v889 = vsub.f32 %v791, %v870
  %v890 = vsub.f32 %v792, %v874
  %v891 = vmul.f32 %v883, 1.442695
  %v892 = vpow.pop %v891
  %v893 = vmul.f32 %v884, 1.442695
  %v894 = vpow.pop %v893
  %v895 = vmul.f32 %v885, 1.442695
  %v896 = vpow.pop %v895
  %v897 = vmul.f32 %v886, 1.442695
  %v898 = vpow.pop %v897
  %v899 = vmul.f32 %v887, 1.442695
  %v900 = vpow.pop %v899
  %v901 = vmul.f32 %v888, 1.442695
  %v902 = vpow.pop %v901
  %v903 = vmul.f32 %v889, 1.442695
  %v904 = vpow.pop %v903
  %v905 = vmul.f32 %v890, 1.442695
  %v906 = vpow.pop %v905
  %v907 = vmul.f32 %v892, %v678
  %v908 = vmul.f32 %v894, %v678
  %v909 = vmul.f32 %v896, %v678
  %v910 = vmul.f32 %v898, %v678
  %v911 = vmul.f32 %v900, %v678
  %v912 = vmul.f32 %v902, %v678
  %v913 = vmul.f32 %v904, %v678
  %v914 = vmul.f32 %v906, %v678
  %v915 = vrot.slane %v907, 4
  %v916 = vadd.f32 %v907, %v915
  %v917 = vrot.slane %v916, 2
  %v918 = vadd.f32 %v916, %v917
  %v919 = vrot.slane %v918, 1
  %v920 = vadd.f32 %v918, %v919
  %v921 = vrot.slane %v908, 4
  %v922 = vadd.f32 %v908, %v921
  %v923 = vrot.slane %v922, 2
  %v924 = vadd.f32 %v922, %v923
  %v925 = vrot.slane %v924, 1
  %v926 = vadd.f32 %v924, %v925
  %v927 = vrot.slane %v909, 4
  %v928 = vadd.f32 %v909, %v927
  %v929 = vrot.slane %v928, 2
  %v930 = vadd.f32 %v928, %v929
  %v931 = vrot.slane %v930, 1
  %v932 = vadd.f32 %v930, %v931
  %v933 = vrot.slane %v910, 4
  %v934 = vadd.f32 %v910, %v933
  %v935 = vrot.slane %v934, 2
  %v936 = vadd.f32 %v934, %v935
  %v937 = vrot.slane %v936, 1
  %v938 = vadd.f32 %v936, %v937
  %v939 = vrot.slane %v911, 4
  %v940 = vadd.f32 %v911, %v939
  %v941 = vrot.slane %v940, 2
  %v942 = vadd.f32 %v940, %v941
  %v943 = vrot.slane %v942, 1
  %v944 = vadd.f32 %v942, %v943
  %v945 = vrot.slane %v912, 4
  %v946 = vadd.f32 %v912, %v945
  %v947 = vrot.slane %v946, 2
  %v948 = vadd.f32 %v946, %v947
  %v949 = vrot.slane %v948, 1
  %v950 = vadd.f32 %v948, %v949
  %v951 = vrot.slane %v913, 4
  %v952 = vadd.f32 %v913, %v951
  %v953 = vrot.slane %v952, 2
  %v954 = vadd.f32 %v952, %v953
  %v955 = vrot.slane %v954, 1
  %v956 = vadd.f32 %v954, %v955
  %v957 = vrot.slane %v914, 4
  %v958 = vadd.f32 %v914, %v957
  %v959 = vrot.slane %v958, 2
  %v960 = vadd.f32 %v958, %v959
  %v961 = vrot.slane %v960, 1
  %v962 = vadd.f32 %v960, %v961
  %v963 = vrot.slane %v892, 4
  %v964 = vadd.f32 %v892, %v963
  %v965 = vrot.slane %v964, 2
  %v966 = vadd.f32 %v964, %v965
  %v967 = vrot.slane %v966, 1
  %v968 = vadd.f32 %v966, %v967
  %v969 = vrot.slane %v894, 4
  %v970 = vadd.f32 %v894, %v969
  %v971 = vrot.slane %v970, 2
  %v972 = vadd.f32 %v970, %v971
  %v973 = vrot.slane %v972, 1
  %v974 = vadd.f32 %v972, %v973
  %v975 = vrot.slane %v896, 4
  %v976 = vadd.f32 %v896, %v975
  %v977 = vrot.slane %v976, 2
  %v978 = vadd.f32 %v976, %v977
  %v979 = vrot.slane %v978, 1
  %v980 = vadd.f32 %v978, %v979
  %v981 = vrot.slane %v898, 4
  %v982 = vadd.f32 %v898, %v981
  %v983 = vrot.slane %v982, 2
  %v984 = vadd.f32 %v982, %v983
  %v985 = vrot.slane %v984, 1
  %v986 = vadd.f32 %v984, %v985
  %v987 = vrot.slane %v900, 4
  %v988 = vadd.f32 %v900, %v987
  %v989 = vrot.slane %v988, 2
  %v990 = vadd.f32 %v988, %v989
  %v991 = vrot.slane %v990, 1
  %v992 = vadd.f32 %v990, %v991
  %v993 = vrot.slane %v902, 4
  %v994 = vadd.f32 %v902, %v993
  %v995 = vrot.slane %v994, 2
  %v996 = vadd.f32 %v994, %v995
  %v997 = vrot.slane %v996, 1
  %v998 = vadd.f32 %v996, %v997
  %v999 = vrot.slane %v904, 4
  %v1000 = vadd.f32 %v904, %v999
  %v1001 = vrot.slane %v1000, 2
  %v1002 = vadd.f32 %v1000, %v1001
  %v1003 = vrot.slane %v1002, 1
  %v1004 = vadd.f32 %v1002, %v1003
  %v1005 = vrot.slane %v906, 4
  %v1006 = vadd.f32 %v906, %v1005
  %v1007 = vrot.slane %v1006, 2
  %v1008 = vadd.f32 %v1006, %v1007
  %v1009 = vrot.slane %v1008, 1
  %v1010 = vadd.f32 %v1008, %v1009
  %v1011 = vrcp.pop %v968
  %v1012 = vrcp.pop %v974
  %v1013 = vrcp.pop %v980
  %v1014 = vrcp.pop %v986
  %v1015 = vrcp.pop %v992
  %v1016 = vrcp.pop %v998
  %v1017 = vrcp.pop %v1004
  %v1018 = vrcp.pop %v1010
  %v1019 = vmul.f32 %v920, %v1011
  %v1020 = vmul.f32 %v926, %v1012
  %v1021 = vmul.f32 %v932, %v1013
  %v1022 = vmul.f32 %v938, %v1014
  %v1023 = vmul.f32 %v944, %v1015
  %v1024 = vmul.f32 %v950, %v1016
  %v1025 = vmul.f32 %v956, %v1017
  %v1026 = vmul.f32 %v962, %v1018
  %v1035 = vsel %vm651, %v1020, %v1019
  %v1036 = vsel %vm653, %v1021, %v1035
  %v1037 = vsel %vm655, %v1022, %v1036
  %v1038 = vsel %vm657, %v1023, %v1037
  %v1039 = vsel %vm659, %v1024, %v1038
  %v1040 = vsel %vm661, %v1025, %v1039
  %v1041 = vsel %vm663, %v1026, %v1040
  %s1043 = scalar_lea.vmem [#allocation3], %s668
  %1044 = vst [vmem:[%s1043] sm:$0xff] %v1041
  %s1045 = sadd.s32 0, 16
  %s1046 = scalar_lea.vmem [#allocation2], %s1045
  %v1047 = vld [vmem:[%s1046] sm:$0xff]
  %s1048 = sadd.s32 16, 32
  %s1049 = sadd.s32 0, %s1048
  %s1050 = scalar_lea.vmem [#allocation2], %s1049
  %v1051 = vld [vmem:[%s1050] sm:$0xff]
  %s1052 = sadd.s32 16, 64
  %s1053 = sadd.s32 0, %s1052
  %s1054 = scalar_lea.vmem [#allocation2], %s1053
  %v1055 = vld [vmem:[%s1054] sm:$0xff]
  %v1056 = vrot.slane %v1051, 4
  %v1057 = vmax.f32 %v1051, %v1056
  %v1058 = vrot.slane %v1057, 2
  %v1059 = vmax.f32 %v1057, %v1058
  %v1060 = vrot.slane %v1059, 1
  %v1061 = vmax.f32 %v1059, %v1060
  %v1062 = vrot.slane %v1051, 4
  %v1063 = vmin.f32 %v1051, %v1062
  %v1064 = vrot.slane %v1063, 2
  %v1065 = vmin.f32 %v1063, %v1064
  %v1066 = vrot.slane %v1065, 1
  %v1067 = vmin.f32 %v1065, %v1066
  %vm1068 = vcmp.ge.f32.partialorder %v1047, 0.0
  %v1069 = vmul.f32 %v1047, %v1061
  %v1070 = vmul.f32 %v1047, %v1067
  %v1071 = vsel %vm1068, %v1069, %v1070
  %v1073 = vcombine.high %v1047, %v1047
  %v1075 = vunpack.c.l.s4 1966171168
  %v1076 = vunpack.c.0.s8 %v1075
  %v1077 = vlaneseq
  %v1078 = vshrl.u32 %v1077, 7
  %v1079 = vsub.s32 %v1076, %v1078
  %v1080 = vrot.slane %v1047, %v1079
  %v1082 = vunpack.c.l.s4 1966171168
  %v1083 = vunpack.c.0.s8 %v1082
  %v1084 = vlaneseq
  %v1085 = vshrl.u32 %v1084, 7
  %v1086 = vsub.s32 %v1083, %v1085
  %v1087 = vrot.slane %v1073, %v1086
  %v1088 = vcombine.high %v1080, %v1080
  %v1089 = vcombine.high %v1087, %v1087
  %v1091 = vunpack.c.l.s4 1966171168
  %v1092 = vunpack.c.0.s8 %v1091
  %v1093 = vlaneseq
  %v1094 = vshrl.u32 %v1093, 7
  %v1095 = vsub.s32 %v1092, %v1094
  %v1096 = vrot.slane %v1080, %v1095
  %v1098 = vunpack.c.l.s4 1966171168
  %v1099 = vunpack.c.0.s8 %v1098
  %v1100 = vlaneseq
  %v1101 = vshrl.u32 %v1100, 7
  %v1102 = vsub.s32 %v1099, %v1101
  %v1103 = vrot.slane %v1087, %v1102
  %v1105 = vunpack.c.l.s4 1966171168
  %v1106 = vunpack.c.0.s8 %v1105
  %v1107 = vlaneseq
  %v1108 = vshrl.u32 %v1107, 7
  %v1109 = vsub.s32 %v1106, %v1108
  %v1110 = vrot.slane %v1088, %v1109
  %v1112 = vunpack.c.l.s4 1966171168
  %v1113 = vunpack.c.0.s8 %v1112
  %v1114 = vlaneseq
  %v1115 = vshrl.u32 %v1114, 7
  %v1116 = vsub.s32 %v1113, %v1115
  %v1117 = vrot.slane %v1089, %v1116
  %v1118 = vcombine.high %v1096, %v1096
  %v1119 = vcombine.high %v1103, %v1103
  %v1120 = vcombine.high %v1110, %v1110
  %v1121 = vcombine.high %v1117, %v1117
  %v1122 = vlaneseq
  %v1123 = vshrl.u32 %v1122, 7
  %v1124 = vsub.s32 0, %v1123
  %v1125 = vrot.slane %v1096, %v1124
  %v1126 = vlaneseq
  %v1127 = vshrl.u32 %v1126, 7
  %v1128 = vsub.s32 0, %v1127
  %v1129 = vrot.slane %v1110, %v1128
  %v1130 = vlaneseq
  %v1131 = vshrl.u32 %v1130, 7
  %v1132 = vsub.s32 0, %v1131
  %v1133 = vrot.slane %v1118, %v1132
  %v1134 = vlaneseq
  %v1135 = vshrl.u32 %v1134, 7
  %v1136 = vsub.s32 0, %v1135
  %v1137 = vrot.slane %v1120, %v1136
  %v1138 = vlaneseq
  %v1139 = vshrl.u32 %v1138, 7
  %v1140 = vsub.s32 0, %v1139
  %v1141 = vrot.slane %v1103, %v1140
  %v1142 = vlaneseq
  %v1143 = vshrl.u32 %v1142, 7
  %v1144 = vsub.s32 0, %v1143
  %v1145 = vrot.slane %v1117, %v1144
  %v1146 = vlaneseq
  %v1147 = vshrl.u32 %v1146, 7
  %v1148 = vsub.s32 0, %v1147
  %v1149 = vrot.slane %v1119, %v1148
  %v1150 = vlaneseq
  %v1151 = vshrl.u32 %v1150, 7
  %v1152 = vsub.s32 0, %v1151
  %v1153 = vrot.slane %v1121, %v1152
  %v1162 = vmul.f32 %v1125, %v1051
  %v1163 = vmul.f32 %v1129, %v1051
  %v1164 = vmul.f32 %v1133, %v1051
  %v1165 = vmul.f32 %v1137, %v1051
  %v1166 = vmul.f32 %v1141, %v1051
  %v1167 = vmul.f32 %v1145, %v1051
  %v1168 = vmul.f32 %v1149, %v1051
  %v1169 = vmul.f32 %v1153, %v1051
  %v1171 = vcombine.high %v1071, %v1071
  %v1173 = vunpack.c.l.s4 1966171168
  %v1174 = vunpack.c.0.s8 %v1173
  %v1175 = vlaneseq
  %v1176 = vshrl.u32 %v1175, 7
  %v1177 = vsub.s32 %v1174, %v1176
  %v1178 = vrot.slane %v1071, %v1177
  %v1180 = vunpack.c.l.s4 1966171168
  %v1181 = vunpack.c.0.s8 %v1180
  %v1182 = vlaneseq
  %v1183 = vshrl.u32 %v1182, 7
  %v1184 = vsub.s32 %v1181, %v1183
  %v1185 = vrot.slane %v1171, %v1184
  %v1186 = vcombine.high %v1178, %v1178
  %v1187 = vcombine.high %v1185, %v1185
  %v1189 = vunpack.c.l.s4 1966171168
  %v1190 = vunpack.c.0.s8 %v1189
  %v1191 = vlaneseq
  %v1192 = vshrl.u32 %v1191, 7
  %v1193 = vsub.s32 %v1190, %v1192
  %v1194 = vrot.slane %v1178, %v1193
  %v1196 = vunpack.c.l.s4 1966171168
  %v1197 = vunpack.c.0.s8 %v1196
  %v1198 = vlaneseq
  %v1199 = vshrl.u32 %v1198, 7
  %v1200 = vsub.s32 %v1197, %v1199
  %v1201 = vrot.slane %v1185, %v1200
  %v1203 = vunpack.c.l.s4 1966171168
  %v1204 = vunpack.c.0.s8 %v1203
  %v1205 = vlaneseq
  %v1206 = vshrl.u32 %v1205, 7
  %v1207 = vsub.s32 %v1204, %v1206
  %v1208 = vrot.slane %v1186, %v1207
  %v1210 = vunpack.c.l.s4 1966171168
  %v1211 = vunpack.c.0.s8 %v1210
  %v1212 = vlaneseq
  %v1213 = vshrl.u32 %v1212, 7
  %v1214 = vsub.s32 %v1211, %v1213
  %v1215 = vrot.slane %v1187, %v1214
  %v1216 = vcombine.high %v1194, %v1194
  %v1217 = vcombine.high %v1201, %v1201
  %v1218 = vcombine.high %v1208, %v1208
  %v1219 = vcombine.high %v1215, %v1215
  %v1220 = vlaneseq
  %v1221 = vshrl.u32 %v1220, 7
  %v1222 = vsub.s32 0, %v1221
  %v1223 = vrot.slane %v1194, %v1222
  %v1224 = vlaneseq
  %v1225 = vshrl.u32 %v1224, 7
  %v1226 = vsub.s32 0, %v1225
  %v1227 = vrot.slane %v1208, %v1226
  %v1228 = vlaneseq
  %v1229 = vshrl.u32 %v1228, 7
  %v1230 = vsub.s32 0, %v1229
  %v1231 = vrot.slane %v1216, %v1230
  %v1232 = vlaneseq
  %v1233 = vshrl.u32 %v1232, 7
  %v1234 = vsub.s32 0, %v1233
  %v1235 = vrot.slane %v1218, %v1234
  %v1236 = vlaneseq
  %v1237 = vshrl.u32 %v1236, 7
  %v1238 = vsub.s32 0, %v1237
  %v1239 = vrot.slane %v1201, %v1238
  %v1240 = vlaneseq
  %v1241 = vshrl.u32 %v1240, 7
  %v1242 = vsub.s32 0, %v1241
  %v1243 = vrot.slane %v1215, %v1242
  %v1244 = vlaneseq
  %v1245 = vshrl.u32 %v1244, 7
  %v1246 = vsub.s32 0, %v1245
  %v1247 = vrot.slane %v1217, %v1246
  %v1248 = vlaneseq
  %v1249 = vshrl.u32 %v1248, 7
  %v1250 = vsub.s32 0, %v1249
  %v1251 = vrot.slane %v1219, %v1250
  %v1260 = vsub.f32 %v1162, %v1223
  %v1261 = vsub.f32 %v1163, %v1227
  %v1262 = vsub.f32 %v1164, %v1231
  %v1263 = vsub.f32 %v1165, %v1235
  %v1264 = vsub.f32 %v1166, %v1239
  %v1265 = vsub.f32 %v1167, %v1243
  %v1266 = vsub.f32 %v1168, %v1247
  %v1267 = vsub.f32 %v1169, %v1251
  %v1268 = vmul.f32 %v1260, 1.442695
  %v1269 = vpow.pop %v1268
  %v1270 = vmul.f32 %v1261, 1.442695
  %v1271 = vpow.pop %v1270
  %v1272 = vmul.f32 %v1262, 1.442695
  %v1273 = vpow.pop %v1272
  %v1274 = vmul.f32 %v1263, 1.442695
  %v1275 = vpow.pop %v1274
  %v1276 = vmul.f32 %v1264, 1.442695
  %v1277 = vpow.pop %v1276
  %v1278 = vmul.f32 %v1265, 1.442695
  %v1279 = vpow.pop %v1278
  %v1280 = vmul.f32 %v1266, 1.442695
  %v1281 = vpow.pop %v1280
  %v1282 = vmul.f32 %v1267, 1.442695
  %v1283 = vpow.pop %v1282
  %v1284 = vmul.f32 %v1269, %v1055
  %v1285 = vmul.f32 %v1271, %v1055
  %v1286 = vmul.f32 %v1273, %v1055
  %v1287 = vmul.f32 %v1275, %v1055
  %v1288 = vmul.f32 %v1277, %v1055
  %v1289 = vmul.f32 %v1279, %v1055
  %v1290 = vmul.f32 %v1281, %v1055
  %v1291 = vmul.f32 %v1283, %v1055
  %v1292 = vrot.slane %v1284, 4
  %v1293 = vadd.f32 %v1284, %v1292
  %v1294 = vrot.slane %v1293, 2
  %v1295 = vadd.f32 %v1293, %v1294
  %v1296 = vrot.slane %v1295, 1
  %v1297 = vadd.f32 %v1295, %v1296
  %v1298 = vrot.slane %v1285, 4
  %v1299 = vadd.f32 %v1285, %v1298
  %v1300 = vrot.slane %v1299, 2
  %v1301 = vadd.f32 %v1299, %v1300
  %v1302 = vrot.slane %v1301, 1
  %v1303 = vadd.f32 %v1301, %v1302
  %v1304 = vrot.slane %v1286, 4
  %v1305 = vadd.f32 %v1286, %v1304
  %v1306 = vrot.slane %v1305, 2
  %v1307 = vadd.f32 %v1305, %v1306
  %v1308 = vrot.slane %v1307, 1
  %v1309 = vadd.f32 %v1307, %v1308
  %v1310 = vrot.slane %v1287, 4
  %v1311 = vadd.f32 %v1287, %v1310
  %v1312 = vrot.slane %v1311, 2
  %v1313 = vadd.f32 %v1311, %v1312
  %v1314 = vrot.slane %v1313, 1
  %v1315 = vadd.f32 %v1313, %v1314
  %v1316 = vrot.slane %v1288, 4
  %v1317 = vadd.f32 %v1288, %v1316
  %v1318 = vrot.slane %v1317, 2
  %v1319 = vadd.f32 %v1317, %v1318
  %v1320 = vrot.slane %v1319, 1
  %v1321 = vadd.f32 %v1319, %v1320
  %v1322 = vrot.slane %v1289, 4
  %v1323 = vadd.f32 %v1289, %v1322
  %v1324 = vrot.slane %v1323, 2
  %v1325 = vadd.f32 %v1323, %v1324
  %v1326 = vrot.slane %v1325, 1
  %v1327 = vadd.f32 %v1325, %v1326
  %v1328 = vrot.slane %v1290, 4
  %v1329 = vadd.f32 %v1290, %v1328
  %v1330 = vrot.slane %v1329, 2
  %v1331 = vadd.f32 %v1329, %v1330
  %v1332 = vrot.slane %v1331, 1
  %v1333 = vadd.f32 %v1331, %v1332
  %v1334 = vrot.slane %v1291, 4
  %v1335 = vadd.f32 %v1291, %v1334
  %v1336 = vrot.slane %v1335, 2
  %v1337 = vadd.f32 %v1335, %v1336
  %v1338 = vrot.slane %v1337, 1
  %v1339 = vadd.f32 %v1337, %v1338
  %v1340 = vrot.slane %v1269, 4
  %v1341 = vadd.f32 %v1269, %v1340
  %v1342 = vrot.slane %v1341, 2
  %v1343 = vadd.f32 %v1341, %v1342
  %v1344 = vrot.slane %v1343, 1
  %v1345 = vadd.f32 %v1343, %v1344
  %v1346 = vrot.slane %v1271, 4
  %v1347 = vadd.f32 %v1271, %v1346
  %v1348 = vrot.slane %v1347, 2
  %v1349 = vadd.f32 %v1347, %v1348
  %v1350 = vrot.slane %v1349, 1
  %v1351 = vadd.f32 %v1349, %v1350
  %v1352 = vrot.slane %v1273, 4
  %v1353 = vadd.f32 %v1273, %v1352
  %v1354 = vrot.slane %v1353, 2
  %v1355 = vadd.f32 %v1353, %v1354
  %v1356 = vrot.slane %v1355, 1
  %v1357 = vadd.f32 %v1355, %v1356
  %v1358 = vrot.slane %v1275, 4
  %v1359 = vadd.f32 %v1275, %v1358
  %v1360 = vrot.slane %v1359, 2
  %v1361 = vadd.f32 %v1359, %v1360
  %v1362 = vrot.slane %v1361, 1
  %v1363 = vadd.f32 %v1361, %v1362
  %v1364 = vrot.slane %v1277, 4
  %v1365 = vadd.f32 %v1277, %v1364
  %v1366 = vrot.slane %v1365, 2
  %v1367 = vadd.f32 %v1365, %v1366
  %v1368 = vrot.slane %v1367, 1
  %v1369 = vadd.f32 %v1367, %v1368
  %v1370 = vrot.slane %v1279, 4
  %v1371 = vadd.f32 %v1279, %v1370
  %v1372 = vrot.slane %v1371, 2
  %v1373 = vadd.f32 %v1371, %v1372
  %v1374 = vrot.slane %v1373, 1
  %v1375 = vadd.f32 %v1373, %v1374
  %v1376 = vrot.slane %v1281, 4
  %v1377 = vadd.f32 %v1281, %v1376
  %v1378 = vrot.slane %v1377, 2
  %v1379 = vadd.f32 %v1377, %v1378
  %v1380 = vrot.slane %v1379, 1
  %v1381 = vadd.f32 %v1379, %v1380
  %v1382 = vrot.slane %v1283, 4
  %v1383 = vadd.f32 %v1283, %v1382
  %v1384 = vrot.slane %v1383, 2
  %v1385 = vadd.f32 %v1383, %v1384
  %v1386 = vrot.slane %v1385, 1
  %v1387 = vadd.f32 %v1385, %v1386
  %v1388 = vrcp.pop %v1345
  %v1389 = vrcp.pop %v1351
  %v1390 = vrcp.pop %v1357
  %v1391 = vrcp.pop %v1363
  %v1392 = vrcp.pop %v1369
  %v1393 = vrcp.pop %v1375
  %v1394 = vrcp.pop %v1381
  %v1395 = vrcp.pop %v1387
  %v1396 = vmul.f32 %v1297, %v1388
  %v1397 = vmul.f32 %v1303, %v1389
  %v1398 = vmul.f32 %v1309, %v1390
  %v1399 = vmul.f32 %v1315, %v1391
  %v1400 = vmul.f32 %v1321, %v1392
  %v1401 = vmul.f32 %v1327, %v1393
  %v1402 = vmul.f32 %v1333, %v1394
  %v1403 = vmul.f32 %v1339, %v1395
  %v1412 = vsel %vm651, %v1397, %v1396
  %v1413 = vsel %vm653, %v1398, %v1412
  %v1414 = vsel %vm655, %v1399, %v1413
  %v1415 = vsel %vm657, %v1400, %v1414
  %v1416 = vsel %vm659, %v1401, %v1415
  %v1417 = vsel %vm661, %v1402, %v1416
  %v1418 = vsel %vm663, %v1403, %v1417
  %s1420 = scalar_lea.vmem [#allocation3], %s1045
  %1421 = vst [vmem:[%s1420] sm:$0xff] %v1418
  %s1422 = sadd.s32 0, 24
  %s1423 = scalar_lea.vmem [#allocation2], %s1422
  %v1424 = vld [vmem:[%s1423] sm:$0xff]
  %s1425 = sadd.s32 24, 32
  %s1426 = sadd.s32 0, %s1425
  %s1427 = scalar_lea.vmem [#allocation2], %s1426
  %v1428 = vld [vmem:[%s1427] sm:$0xff]
  %s1429 = sadd.s32 24, 64
  %s1430 = sadd.s32 0, %s1429
  %s1431 = scalar_lea.vmem [#allocation2], %s1430
  %v1432 = vld [vmem:[%s1431] sm:$0xff]
  %v1433 = vrot.slane %v1428, 4
  %v1434 = vmax.f32 %v1428, %v1433
  %v1435 = vrot.slane %v1434, 2
  %v1436 = vmax.f32 %v1434, %v1435
  %v1437 = vrot.slane %v1436, 1
  %v1438 = vmax.f32 %v1436, %v1437
  %v1439 = vrot.slane %v1428, 4
  %v1440 = vmin.f32 %v1428, %v1439
  %v1441 = vrot.slane %v1440, 2
  %v1442 = vmin.f32 %v1440, %v1441
  %v1443 = vrot.slane %v1442, 1
  %v1444 = vmin.f32 %v1442, %v1443
  %vm1445 = vcmp.ge.f32.partialorder %v1424, 0.0
  %v1446 = vmul.f32 %v1424, %v1438
  %v1447 = vmul.f32 %v1424, %v1444
  %v1448 = vsel %vm1445, %v1446, %v1447
  %v1450 = vcombine.high %v1424, %v1424
  %v1452 = vunpack.c.l.s4 1966171168
  %v1453 = vunpack.c.0.s8 %v1452
  %v1454 = vlaneseq
  %v1455 = vshrl.u32 %v1454, 7
  %v1456 = vsub.s32 %v1453, %v1455
  %v1457 = vrot.slane %v1424, %v1456
  %v1459 = vunpack.c.l.s4 1966171168
  %v1460 = vunpack.c.0.s8 %v1459
  %v1461 = vlaneseq
  %v1462 = vshrl.u32 %v1461, 7
  %v1463 = vsub.s32 %v1460, %v1462
  %v1464 = vrot.slane %v1450, %v1463
  %v1465 = vcombine.high %v1457, %v1457
  %v1466 = vcombine.high %v1464, %v1464
  %v1468 = vunpack.c.l.s4 1966171168
  %v1469 = vunpack.c.0.s8 %v1468
  %v1470 = vlaneseq
  %v1471 = vshrl.u32 %v1470, 7
  %v1472 = vsub.s32 %v1469, %v1471
  %v1473 = vrot.slane %v1457, %v1472
  %v1475 = vunpack.c.l.s4 1966171168
  %v1476 = vunpack.c.0.s8 %v1475
  %v1477 = vlaneseq
  %v1478 = vshrl.u32 %v1477, 7
  %v1479 = vsub.s32 %v1476, %v1478
  %v1480 = vrot.slane %v1464, %v1479
  %v1482 = vunpack.c.l.s4 1966171168
  %v1483 = vunpack.c.0.s8 %v1482
  %v1484 = vlaneseq
  %v1485 = vshrl.u32 %v1484, 7
  %v1486 = vsub.s32 %v1483, %v1485
  %v1487 = vrot.slane %v1465, %v1486
  %v1489 = vunpack.c.l.s4 1966171168
  %v1490 = vunpack.c.0.s8 %v1489
  %v1491 = vlaneseq
  %v1492 = vshrl.u32 %v1491, 7
  %v1493 = vsub.s32 %v1490, %v1492
  %v1494 = vrot.slane %v1466, %v1493
  %v1495 = vcombine.high %v1473, %v1473
  %v1496 = vcombine.high %v1480, %v1480
  %v1497 = vcombine.high %v1487, %v1487
  %v1498 = vcombine.high %v1494, %v1494
  %v1499 = vlaneseq
  %v1500 = vshrl.u32 %v1499, 7
  %v1501 = vsub.s32 0, %v1500
  %v1502 = vrot.slane %v1473, %v1501
  %v1503 = vlaneseq
  %v1504 = vshrl.u32 %v1503, 7
  %v1505 = vsub.s32 0, %v1504
  %v1506 = vrot.slane %v1487, %v1505
  %v1507 = vlaneseq
  %v1508 = vshrl.u32 %v1507, 7
  %v1509 = vsub.s32 0, %v1508
  %v1510 = vrot.slane %v1495, %v1509
  %v1511 = vlaneseq
  %v1512 = vshrl.u32 %v1511, 7
  %v1513 = vsub.s32 0, %v1512
  %v1514 = vrot.slane %v1497, %v1513
  %v1515 = vlaneseq
  %v1516 = vshrl.u32 %v1515, 7
  %v1517 = vsub.s32 0, %v1516
  %v1518 = vrot.slane %v1480, %v1517
  %v1519 = vlaneseq
  %v1520 = vshrl.u32 %v1519, 7
  %v1521 = vsub.s32 0, %v1520
  %v1522 = vrot.slane %v1494, %v1521
  %v1523 = vlaneseq
  %v1524 = vshrl.u32 %v1523, 7
  %v1525 = vsub.s32 0, %v1524
  %v1526 = vrot.slane %v1496, %v1525
  %v1527 = vlaneseq
  %v1528 = vshrl.u32 %v1527, 7
  %v1529 = vsub.s32 0, %v1528
  %v1530 = vrot.slane %v1498, %v1529
  %v1539 = vmul.f32 %v1502, %v1428
  %v1540 = vmul.f32 %v1506, %v1428
  %v1541 = vmul.f32 %v1510, %v1428
  %v1542 = vmul.f32 %v1514, %v1428
  %v1543 = vmul.f32 %v1518, %v1428
  %v1544 = vmul.f32 %v1522, %v1428
  %v1545 = vmul.f32 %v1526, %v1428
  %v1546 = vmul.f32 %v1530, %v1428
  %v1548 = vcombine.high %v1448, %v1448
  %v1550 = vunpack.c.l.s4 1966171168
  %v1551 = vunpack.c.0.s8 %v1550
  %v1552 = vlaneseq
  %v1553 = vshrl.u32 %v1552, 7
  %v1554 = vsub.s32 %v1551, %v1553
  %v1555 = vrot.slane %v1448, %v1554
  %v1557 = vunpack.c.l.s4 1966171168
  %v1558 = vunpack.c.0.s8 %v1557
  %v1559 = vlaneseq
  %v1560 = vshrl.u32 %v1559, 7
  %v1561 = vsub.s32 %v1558, %v1560
  %v1562 = vrot.slane %v1548, %v1561
  %v1563 = vcombine.high %v1555, %v1555
  %v1564 = vcombine.high %v1562, %v1562
  %v1566 = vunpack.c.l.s4 1966171168
  %v1567 = vunpack.c.0.s8 %v1566
  %v1568 = vlaneseq
  %v1569 = vshrl.u32 %v1568, 7
  %v1570 = vsub.s32 %v1567, %v1569
  %v1571 = vrot.slane %v1555, %v1570
  %v1573 = vunpack.c.l.s4 1966171168
  %v1574 = vunpack.c.0.s8 %v1573
  %v1575 = vlaneseq
  %v1576 = vshrl.u32 %v1575, 7
  %v1577 = vsub.s32 %v1574, %v1576
  %v1578 = vrot.slane %v1562, %v1577
  %v1580 = vunpack.c.l.s4 1966171168
  %v1581 = vunpack.c.0.s8 %v1580
  %v1582 = vlaneseq
  %v1583 = vshrl.u32 %v1582, 7
  %v1584 = vsub.s32 %v1581, %v1583
  %v1585 = vrot.slane %v1563, %v1584
  %v1587 = vunpack.c.l.s4 1966171168
  %v1588 = vunpack.c.0.s8 %v1587
  %v1589 = vlaneseq
  %v1590 = vshrl.u32 %v1589, 7
  %v1591 = vsub.s32 %v1588, %v1590
  %v1592 = vrot.slane %v1564, %v1591
  %v1593 = vcombine.high %v1571, %v1571
  %v1594 = vcombine.high %v1578, %v1578
  %v1595 = vcombine.high %v1585, %v1585
  %v1596 = vcombine.high %v1592, %v1592
  %v1597 = vlaneseq
  %v1598 = vshrl.u32 %v1597, 7
  %v1599 = vsub.s32 0, %v1598
  %v1600 = vrot.slane %v1571, %v1599
  %v1601 = vlaneseq
  %v1602 = vshrl.u32 %v1601, 7
  %v1603 = vsub.s32 0, %v1602
  %v1604 = vrot.slane %v1585, %v1603
  %v1605 = vlaneseq
  %v1606 = vshrl.u32 %v1605, 7
  %v1607 = vsub.s32 0, %v1606
  %v1608 = vrot.slane %v1593, %v1607
  %v1609 = vlaneseq
  %v1610 = vshrl.u32 %v1609, 7
  %v1611 = vsub.s32 0, %v1610
  %v1612 = vrot.slane %v1595, %v1611
  %v1613 = vlaneseq
  %v1614 = vshrl.u32 %v1613, 7
  %v1615 = vsub.s32 0, %v1614
  %v1616 = vrot.slane %v1578, %v1615
  %v1617 = vlaneseq
  %v1618 = vshrl.u32 %v1617, 7
  %v1619 = vsub.s32 0, %v1618
  %v1620 = vrot.slane %v1592, %v1619
  %v1621 = vlaneseq
  %v1622 = vshrl.u32 %v1621, 7
  %v1623 = vsub.s32 0, %v1622
  %v1624 = vrot.slane %v1594, %v1623
  %v1625 = vlaneseq
  %v1626 = vshrl.u32 %v1625, 7
  %v1627 = vsub.s32 0, %v1626
  %v1628 = vrot.slane %v1596, %v1627
  %v1637 = vsub.f32 %v1539, %v1600
  %v1638 = vsub.f32 %v1540, %v1604
  %v1639 = vsub.f32 %v1541, %v1608
  %v1640 = vsub.f32 %v1542, %v1612
  %v1641 = vsub.f32 %v1543, %v1616
  %v1642 = vsub.f32 %v1544, %v1620
  %v1643 = vsub.f32 %v1545, %v1624
  %v1644 = vsub.f32 %v1546, %v1628
  %v1645 = vmul.f32 %v1637, 1.442695
  %v1646 = vpow.pop %v1645
  %v1647 = vmul.f32 %v1638, 1.442695
  %v1648 = vpow.pop %v1647
  %v1649 = vmul.f32 %v1639, 1.442695
  %v1650 = vpow.pop %v1649
  %v1651 = vmul.f32 %v1640, 1.442695
  %v1652 = vpow.pop %v1651
  %v1653 = vmul.f32 %v1641, 1.442695
  %v1654 = vpow.pop %v1653
  %v1655 = vmul.f32 %v1642, 1.442695
  %v1656 = vpow.pop %v1655
  %v1657 = vmul.f32 %v1643, 1.442695
  %v1658 = vpow.pop %v1657
  %v1659 = vmul.f32 %v1644, 1.442695
  %v1660 = vpow.pop %v1659
  %v1661 = vmul.f32 %v1646, %v1432
  %v1662 = vmul.f32 %v1648, %v1432
  %v1663 = vmul.f32 %v1650, %v1432
  %v1664 = vmul.f32 %v1652, %v1432
  %v1665 = vmul.f32 %v1654, %v1432
  %v1666 = vmul.f32 %v1656, %v1432
  %v1667 = vmul.f32 %v1658, %v1432
  %v1668 = vmul.f32 %v1660, %v1432
  %v1669 = vrot.slane %v1661, 4
  %v1670 = vadd.f32 %v1661, %v1669
  %v1671 = vrot.slane %v1670, 2
  %v1672 = vadd.f32 %v1670, %v1671
  %v1673 = vrot.slane %v1672, 1
  %v1674 = vadd.f32 %v1672, %v1673
  %v1675 = vrot.slane %v1662, 4
  %v1676 = vadd.f32 %v1662, %v1675
  %v1677 = vrot.slane %v1676, 2
  %v1678 = vadd.f32 %v1676, %v1677
  %v1679 = vrot.slane %v1678, 1
  %v1680 = vadd.f32 %v1678, %v1679
  %v1681 = vrot.slane %v1663, 4
  %v1682 = vadd.f32 %v1663, %v1681
  %v1683 = vrot.slane %v1682, 2
  %v1684 = vadd.f32 %v1682, %v1683
  %v1685 = vrot.slane %v1684, 1
  %v1686 = vadd.f32 %v1684, %v1685
  %v1687 = vrot.slane %v1664, 4
  %v1688 = vadd.f32 %v1664, %v1687
  %v1689 = vrot.slane %v1688, 2
  %v1690 = vadd.f32 %v1688, %v1689
  %v1691 = vrot.slane %v1690, 1
  %v1692 = vadd.f32 %v1690, %v1691
  %v1693 = vrot.slane %v1665, 4
  %v1694 = vadd.f32 %v1665, %v1693
  %v1695 = vrot.slane %v1694, 2
  %v1696 = vadd.f32 %v1694, %v1695
  %v1697 = vrot.slane %v1696, 1
  %v1698 = vadd.f32 %v1696, %v1697
  %v1699 = vrot.slane %v1666, 4
  %v1700 = vadd.f32 %v1666, %v1699
  %v1701 = vrot.slane %v1700, 2
  %v1702 = vadd.f32 %v1700, %v1701
  %v1703 = vrot.slane %v1702, 1
  %v1704 = vadd.f32 %v1702, %v1703
  %v1705 = vrot.slane %v1667, 4
  %v1706 = vadd.f32 %v1667, %v1705
  %v1707 = vrot.slane %v1706, 2
  %v1708 = vadd.f32 %v1706, %v1707
  %v1709 = vrot.slane %v1708, 1
  %v1710 = vadd.f32 %v1708, %v1709
  %v1711 = vrot.slane %v1668, 4
  %v1712 = vadd.f32 %v1668, %v1711
  %v1713 = vrot.slane %v1712, 2
  %v1714 = vadd.f32 %v1712, %v1713
  %v1715 = vrot.slane %v1714, 1
  %v1716 = vadd.f32 %v1714, %v1715
  %v1717 = vrot.slane %v1646, 4
  %v1718 = vadd.f32 %v1646, %v1717
  %v1719 = vrot.slane %v1718, 2
  %v1720 = vadd.f32 %v1718, %v1719
  %v1721 = vrot.slane %v1720, 1
  %v1722 = vadd.f32 %v1720, %v1721
  %v1723 = vrot.slane %v1648, 4
  %v1724 = vadd.f32 %v1648, %v1723
  %v1725 = vrot.slane %v1724, 2
  %v1726 = vadd.f32 %v1724, %v1725
  %v1727 = vrot.slane %v1726, 1
  %v1728 = vadd.f32 %v1726, %v1727
  %v1729 = vrot.slane %v1650, 4
  %v1730 = vadd.f32 %v1650, %v1729
  %v1731 = vrot.slane %v1730, 2
  %v1732 = vadd.f32 %v1730, %v1731
  %v1733 = vrot.slane %v1732, 1
  %v1734 = vadd.f32 %v1732, %v1733
  %v1735 = vrot.slane %v1652, 4
  %v1736 = vadd.f32 %v1652, %v1735
  %v1737 = vrot.slane %v1736, 2
  %v1738 = vadd.f32 %v1736, %v1737
  %v1739 = vrot.slane %v1738, 1
  %v1740 = vadd.f32 %v1738, %v1739
  %v1741 = vrot.slane %v1654, 4
  %v1742 = vadd.f32 %v1654, %v1741
  %v1743 = vrot.slane %v1742, 2
  %v1744 = vadd.f32 %v1742, %v1743
  %v1745 = vrot.slane %v1744, 1
  %v1746 = vadd.f32 %v1744, %v1745
  %v1747 = vrot.slane %v1656, 4
  %v1748 = vadd.f32 %v1656, %v1747
  %v1749 = vrot.slane %v1748, 2
  %v1750 = vadd.f32 %v1748, %v1749
  %v1751 = vrot.slane %v1750, 1
  %v1752 = vadd.f32 %v1750, %v1751
  %v1753 = vrot.slane %v1658, 4
  %v1754 = vadd.f32 %v1658, %v1753
  %v1755 = vrot.slane %v1754, 2
  %v1756 = vadd.f32 %v1754, %v1755
  %v1757 = vrot.slane %v1756, 1
  %v1758 = vadd.f32 %v1756, %v1757
  %v1759 = vrot.slane %v1660, 4
  %v1760 = vadd.f32 %v1660, %v1759
  %v1761 = vrot.slane %v1760, 2
  %v1762 = vadd.f32 %v1760, %v1761
  %v1763 = vrot.slane %v1762, 1
  %v1764 = vadd.f32 %v1762, %v1763
  %v1765 = vrcp.pop %v1722
  %v1766 = vrcp.pop %v1728
  %v1767 = vrcp.pop %v1734
  %v1768 = vrcp.pop %v1740
  %v1769 = vrcp.pop %v1746
  %v1770 = vrcp.pop %v1752
  %v1771 = vrcp.pop %v1758
  %v1772 = vrcp.pop %v1764
  %v1773 = vmul.f32 %v1674, %v1765
  %v1774 = vmul.f32 %v1680, %v1766
  %v1775 = vmul.f32 %v1686, %v1767
  %v1776 = vmul.f32 %v1692, %v1768
  %v1777 = vmul.f32 %v1698, %v1769
  %v1778 = vmul.f32 %v1704, %v1770
  %v1779 = vmul.f32 %v1710, %v1771
  %v1780 = vmul.f32 %v1716, %v1772
  %v1789 = vsel %vm651, %v1774, %v1773
  %v1790 = vsel %vm653, %v1775, %v1789
  %v1791 = vsel %vm655, %v1776, %v1790
  %v1792 = vsel %vm657, %v1777, %v1791
  %v1793 = vsel %vm659, %v1778, %v1792
  %v1794 = vsel %vm661, %v1779, %v1793
  %v1795 = vsel %vm663, %v1780, %v1794
  %s1797 = scalar_lea.vmem [#allocation3], %s1422
  %1798 = vst [vmem:[%s1797] sm:$0xff] %v1795
  %v1799 = vld [vmem:[%s1 + $0x60] sm:$0xff]
  %v1800 = vld [vmem:[%s1 + $0x68] sm:$0xff]
  %v1801 = vld [vmem:[%s1 + $0x70] sm:$0xff]
  %v1802 = vld [vmem:[%s1 + $0x78] sm:$0xff]
  %v1803 = vld [vmem:[#allocation3] sm:$0xff]
  %v1804 = vld [vmem:[#allocation3 + $0x8] sm:$0xff]
  %v1805 = vld [vmem:[#allocation3 + $0x10] sm:$0xff]
  %v1806 = vld [vmem:[#allocation3 + $0x18] sm:$0xff]
  %v1807 = vld [vmem:[%s2 + $0x60] sm:$0xff]
  %v1808 = vld [vmem:[%s2 + $0x68] sm:$0xff]
  %v1809 = vld [vmem:[%s2 + $0x70] sm:$0xff]
  %v1810 = vld [vmem:[%s2 + $0x78] sm:$0xff]
  %1812 = vset.pattern.permute.xlu0 0
  %1813 = vperm.xlu0 %1812, %v1807
  %v1814 = vpop.permute.xlu0 %1813
  %1817 = vset.pattern.permute.xlu0 0
  %1818 = vperm.xlu0 %1817, %v1808
  %v1819 = vpop.permute.xlu0 %1818
  %1822 = vset.pattern.permute.xlu0 0
  %1823 = vperm.xlu0 %1822, %v1809
  %v1824 = vpop.permute.xlu0 %1823
  %1827 = vset.pattern.permute.xlu0 0
  %1828 = vperm.xlu0 %1827, %v1810
  %v1829 = vpop.permute.xlu0 %1828
  %vm1831 = vcmask 261120
  %v1833 = vsel %vm1831, %v1799, 0
  %v1836 = vsel %vm1831, %v1800, 0
  %v1839 = vsel %vm1831, %v1801, 0
  %v1842 = vsel %vm1831, %v1802, 0
  %1844 = vmatprep.subr.mxu0 0.0
  %1845 = vmatpush1.msra.mxu0 %v1803
  %1846 = vmatprep.subr.mxu0 0.0
  %1847 = vmatpush1.msra.mxu0 %v1804
  %1848 = vmatprep.subr.mxu0 0.0
  %1849 = vmatpush1.msra.mxu0 %v1805
  %1850 = vmatprep.subr.mxu0 0.0
  %1851 = vmatpush1.msra.mxu0 %v1806
  %1852 = vmatprep.subr.mxu0 0.0
  %1853 = vmatpush1.msra.mxu0 0.0
  %1854 = vmatprep.subr.mxu0 0.0
  %1855 = vmatpush1.msra.mxu0 0.0
  %1856 = vmatprep.subr.mxu0 0.0
  %1857 = vmatpush1.msra.mxu0 0.0
  %1858 = vmatprep.subr.mxu0 0.0
  %1859 = vmatpush1.msra.mxu0 0.0
  %1860 = vmatprep.subr.mxu0 0.0
  %1861 = vmatpush1.msra.mxu0 0.0
  %1862 = vmatprep.subr.mxu0 0.0
  %1863 = vmatpush1.msra.mxu0 0.0
  %1864 = vmatprep.subr.mxu0 0.0
  %1865 = vmatpush1.msra.mxu0 0.0
  %1866 = vmatprep.subr.mxu0 0.0
  %1867 = vmatpush1.msra.mxu0 0.0
  %1868 = vmatprep.subr.mxu0 0.0
  %1869 = vmatpush1.msra.mxu0 0.0
  %1870 = vmatprep.subr.mxu0 0.0
  %1871 = vmatpush1.msra.mxu0 0.0
  %1872 = vmatprep.subr.mxu0 0.0
  %1873 = vmatpush1.msra.mxu0 0.0
  %1874 = vmatprep.subr.mxu0 0.0
  %1875 = vmatpush1.msra.mxu0 0.0
  %1876 = vmatprep.subr.mxu0 0.0
  %1877 = vmatpush1.msra.mxu0 0.0
  %1878 = vmatprep.subr.mxu0 0.0
  %1879 = vmatpush1.msra.mxu0 0.0
  %1880 = vmatprep.subr.mxu0 0.0
  %1881 = vmatpush1.msra.mxu0 0.0
  %1882 = vmatprep.subr.mxu0 0.0
  %1883 = vmatpush1.msra.mxu0 0.0
  %1884 = vmatprep.subr.mxu0 0.0
  %1885 = vmatpush1.msra.mxu0 0.0
  %1886 = vmatprep.subr.mxu0 0.0
  %1887 = vmatpush1.msra.mxu0 0.0
  %1888 = vmatprep.subr.mxu0 0.0
  %1889 = vmatpush1.msra.mxu0 0.0
  %1890 = vmatprep.subr.mxu0 0.0
  %1891 = vmatpush1.msra.mxu0 0.0
  %1892 = vmatprep.subr.mxu0 0.0
  %1893 = vmatpush1.msra.mxu0 0.0
  %1894 = vmatprep.subr.mxu0 0.0
  %1895 = vmatpush1.msra.mxu0 0.0
  %1896 = vmatprep.subr.mxu0 0.0
  %1897 = vmatpush1.msra.mxu0 0.0
  %1898 = vmatprep.subr.mxu0 0.0
  %1899 = vmatpush1.msra.mxu0 0.0
  %1900 = vmatprep.subr.mxu0 0.0
  %1901 = vmatpush1.msra.mxu0 0.0
  %1902 = vmatprep.subr.mxu0 0.0
  %1903 = vmatpush1.msra.mxu0 0.0
  %1904 = vmatprep.subr.mxu0 0.0
  %1905 = vmatpush1.msra.mxu0 0.0
  %1906 = vmatprep.subr.mxu0 0.0
  %1907 = vmatpush1.msra.mxu0 0.0
  %1908 = vmatprep.mubr.f32.mxu0 0.0
  %1909 = vmatmul.mubr.f32.gmra.mrb[0].mxu0 %v1833
  %v1910 = vpop.f32.mrb[0].mxu0
  %v1911 = vadd.f32 %v1814, %v1910
  %v1912 = vpop.f32.mrb[0].mxu0
  %1913 = vmatprep.mubr.f32.mxu0 0.0
  %1914 = vmatmul.mubr.f32.gmra.mrb[0].mxu0 %v1836
  %v1915 = vpop.f32.mrb[0].mxu0
  %v1916 = vadd.f32 %v1819, %v1915
  %v1917 = vpop.f32.mrb[0].mxu0
  %1918 = vmatprep.mubr.f32.mxu0 0.0
  %1919 = vmatmul.mubr.f32.gmra.mrb[0].mxu0 %v1839
  %v1920 = vpop.f32.mrb[0].mxu0
  %v1921 = vadd.f32 %v1824, %v1920
  %v1922 = vpop.f32.mrb[0].mxu0
  %1923 = vmatprep.mubr.f32.mxu0 0.0
  %1924 = vmatmul.mubr.f32.gmra.mrb[0].mxu0 %v1842
  %v1925 = vpop.f32.mrb[0].mxu0
  %v1926 = vadd.f32 %v1829, %v1925
  %v1927 = vpop.f32.mrb[0].mxu0
  %1928 = vdwg.mxu0
  %1929 = vst [vmem:[%s3] sm:$0xff] %v1911
  %1930 = vst [vmem:[%s3 + $0x8] sm:$0xff] %v1916
  %1931 = vst [vmem:[%s3 + $0x10] sm:$0xff] %v1921
  %1932 = vst [vmem:[%s3 + $0x18] sm:$0xff] %v1926
  // Predicated region
  $region14: #{attention_block_pallas.1} parent=0 // pred_check
    _
  $region15: #{attention_block_pallas.1} parent=0 // pred_check_branch
    %1934 = sbr.rel (0) target = $region17
  $region16: #{attention_block_pallas.1} parent=0 // pred_region
    _
  $region17: #{attention_block_pallas.1} parent=0 // pred_fallthru
    _
  // Predicated region
  $region18: #{attention_block_pallas.1} parent=0 // pred_check
    _
  $region19: #{attention_block_pallas.1} parent=0 // pred_check_branch
    %1936 = sbr.rel (0) target = $region21
  $region20: #{attention_block_pallas.1} parent=0 // pred_region
    _
  $region21: #{attention_block_pallas.1} parent=0 // pred_fallthru
    _

</llo_original>
